<compile_context>
chip_gen: v7x
topology: tpu7x:2x2x1
jax: 0.10.0
libtpu: 0.0.40
codegen_flags: <defaults>
</compile_context>

<pallas_src>
import functools

import jax
import jax.numpy as jnp
from jax import lax
from jax.experimental import pallas as pl
from jax.experimental.pallas import tpu as pltpu


def feature_conv_kernel(w_ref, b_ref, x_ref, o_ref, *, tc):
    """One grid step: o = relu(W @ x + b) over an (NB, C_in, TL) block.

    w_ref: (C_out, C_in) fused conv weight (compute dtype)
    b_ref: (C_out, 1)    fused bias (f32)
    x_ref: (NB, C_in, TL) input block
    o_ref: (NB, C_out, TL) output block
    """
    w = w_ref[...]
    c_out = w.shape[0]
    nb, _, tl = x_ref.shape

    # Hoist the bias broadcast out of every loop (JAX does not CSE broadcasts).
    b_full = jnp.broadcast_to(b_ref[...], (c_out, tc))
    prec = lax.Precision.HIGHEST if w.dtype == jnp.float32 else None

    def row(i, carry):
        # Chunk the lane dimension so each per-row result stays <= C_out*tc f32
        # (bounded vreg pressure even when TL grows to several K lanes).
        for s in range(0, tl, tc):  # static chunk loop; each chunk stored immediately
            xs = x_ref[i, :, pl.ds(s, tc)]                                  # (C_in, tc)
            y = jnp.dot(w, xs, preferred_element_type=jnp.float32, precision=prec)
            o_ref[i, :, pl.ds(s, tc)] = jnp.maximum(y + b_full, 0.0).astype(o_ref.dtype)
        return carry

    # fori_loop (not a static Python unroll) bounds live ranges across rows.
    lax.fori_loop(0, nb, row, 0, unroll=2)


def _largest_divisor_leq(total, cap, quantum=1):
    """Largest multiple of `quantum` dividing `total` and <= cap.

    Falls back to the full extent (always a legal block shape)."""
    cap = max(quantum, min(total, cap))
    cap -= cap % quantum
    t = cap
    while t >= quantum:
        if total % t == 0:
            return t
        t -= quantum
    return total


def _pick_chunk(tl):
    """Lane-chunk size for the in-kernel dot: <=512, divides TL."""
    for tc in (512, 384, 256, 128):
        if tl % tc == 0:
            return tc
    return tl


def _padded_rows(c, dtype):
    """Channel count padded to the sublane tile (8 f32 / 16 bf16 / 32 int8)."""
    itemsize = jnp.dtype(dtype).itemsize
    tile = 8 * max(1, 4 // itemsize)
    return ((c + tile - 1) // tile) * tile


def feature_conv(x, g1, be1, m1, v1, w, g2, be2, m2, v2, eps=1e-5):
    N, C_in, L = x.shape
    w = jnp.asarray(w)
    if w.ndim == 3:          # accept PyTorch's (C_out, C_in, 1) conv weight
        w = w[:, :, 0]
    C_out = w.shape[0]

    f32 = jnp.float32
    # Fold BN1 -> conv -> BN2 (eval mode) into one weight + one bias.
    s1 = g1.astype(f32) / jnp.sqrt(v1.astype(f32) + eps)
    b1 = be1.astype(f32) - m1.astype(f32) * s1
    s2 = g2.astype(f32) / jnp.sqrt(v2.astype(f32) + eps)
    b2 = be2.astype(f32) - m2.astype(f32) * s2
    w32 = w.astype(f32)
    wf = (s2[:, None] * w32) * s1[None, :]                 # (C_out, C_in)
    bf = (s2 * (w32 @ b1) + b2).reshape(C_out, 1)          # (C_out, 1), kept f32

    compute_dtype = x.dtype                                # bf16 path if x is bf16
    in_bytes = jnp.dtype(compute_dtype).itemsize
    out_bytes = jnp.dtype(x.dtype).itemsize

    # Generation-aware VMEM budget (v5e/v6e: 128 MiB, v7x: 64 MiB).
    try:
        vmem_bytes = int(pltpu.get_tpu_info().vmem_capacity_bytes)
    except Exception:
        vmem_bytes = 64 * 1024 * 1024                      # conservative fallback
    vmem_limit = (vmem_bytes * 3) // 4                     # 96 MiB v5e/v6e, 48 MiB v7x
    block_budget = vmem_bytes // 4                         # one (in+out) block; x2 double-buffered

    # Per-lane VMEM cost of one batch row (channels pad to the sublane tile).
    per_lane = (_padded_rows(C_in, compute_dtype) * in_bytes
                + _padded_rows(C_out, x.dtype) * out_bytes)

    def row_bytes(tl):
        return per_lane * (((tl + 127) // 128) * 128)

    # Prefer TL = L: one contiguous HBM slab per step instead of NB*C_in strided
    # segments; fall back to splitting L only when a full row exceeds the budget.
    if row_bytes(L) <= block_budget:
        TL = L
    else:
        TL = _largest_divisor_leq(L, max(128, block_budget // per_lane), 128)
    grid_l = L // TL

    nb_cap = max(1, block_budget // row_bytes(TL))
    NB = _largest_divisor_leq(N, nb_cap, 1)
    # Keep at least a few grid steps when the problem allows it (software
    # pipelining; the two TensorCores on v7x need >1 parallel step).
    MIN_STEPS = 4
    while (N // NB) * grid_l < MIN_STEPS and NB > 1:
        NB = _largest_divisor_leq(N, NB - 1, 1)

    TC = _pick_chunk(TL)
    grid = (N // NB, grid_l)

    cost = pl.CostEstimate(
        flops=2 * N * C_out * C_in * L,
        bytes_accessed=(N * C_in * L) * in_bytes + (N * C_out * L) * out_bytes
                       + C_out * C_in * in_bytes + C_out * 4,
        transcendentals=0,
    )

    return pl.pallas_call(
        functools.partial(feature_conv_kernel, tc=TC),
        out_shape=jax.ShapeDtypeStruct((N, C_out, L), x.dtype),
        grid_spec=pltpu.PrefetchScalarGridSpec(
            num_scalar_prefetch=0,
            grid=grid,
            in_specs=[
                # Grid-invariant fused weight / bias (tiny; constant index map).
                pl.BlockSpec((C_out, C_in), lambda n, l: (0, 0)),
                pl.BlockSpec((C_out, 1), lambda n, l: (0, 0)),
                # Streamed input block.
                pl.BlockSpec((NB, C_in, TL), lambda n, l: (n, 0, l)),
            ],
            out_specs=pl.BlockSpec((NB, C_out, TL), lambda n, l: (n, 0, l)),
        ),
        compiler_params=pltpu.CompilerParams(
            dimension_semantics=("parallel", "parallel"),
            vmem_limit_bytes=vmem_limit,
        ),
        cost_estimate=cost,
    )(wf.astype(compute_dtype), bf, x)


def feature_conv_reference(x, g1, be1, m1, v1, w, g2, be2, m2, v2, eps=1e-5):
    # Pure-JAX reference of the same eval-mode forward pass (un-folded order).
    w = jnp.asarray(w)
    if w.ndim == 3:
        w = w[:, :, 0]
    s1 = g1 / jnp.sqrt(v1 + eps)
    xn = x * s1[None, :, None] + (be1 - m1 * s1)[None, :, None]
    y = jnp.einsum("oi,nil->nol", w, xn)
    s2 = g2 / jnp.sqrt(v2 + eps)
    y = y * s2[None, :, None] + (be2 - m2 * s2)[None, :, None]
    return jnp.maximum(y, 0.0)


if __name__ == "__main__":
    # Small shapes consistent with FeatureConv: (N, C_in, L), C_out output
    # channels.  Big enough to exercise the N-grid and the in-kernel row loop.
    N, C_in, C_out, L = 8, 8, 32, 512

    key = jax.random.PRNGKey(0)
    ks = jax.random.split(key, 10)

    x = jax.random.normal(ks[0], (N, C_in, L), dtype=jnp.float32)

    # BatchNorm1d(in_chn) parameters / running stats
    g1 = jax.random.normal(ks[1], (C_in,), dtype=jnp.float32) * 0.1 + 1.0
    be1 = jax.random.normal(ks[2], (C_in,), dtype=jnp.float32) * 0.1
    m1 = jax.random.normal(ks[3], (C_in,), dtype=jnp.float32) * 0.1
    v1 = jax.random.uniform(ks[4], (C_in,), dtype=jnp.float32, minval=0.5, maxval=1.5)

    # Conv1d(in_chn, out_chn, kernel_size=1, bias=False): weight (C_out, C_in)
    w = jax.random.normal(ks[5], (C_out, C_in), dtype=jnp.float32) * (1.0 / jnp.sqrt(C_in))

    # BatchNorm1d(out_chn) parameters / running stats
    g2 = jax.random.normal(ks[6], (C_out,), dtype=jnp.float32) * 0.1 + 1.0
    be2 = jax.random.normal(ks[7], (C_out,), dtype=jnp.float32) * 0.1
    m2 = jax.random.normal(ks[8], (C_out,), dtype=jnp.float32) * 0.1
    v2 = jax.random.uniform(ks[9], (C_out,), dtype=jnp.float32, minval=0.5, maxval=1.5)

    ref = feature_conv_reference(x, g1, be1, m1, v1, w, g2, be2, m2, v2)

    # f32 data path
    out = feature_conv(x, g1, be1, m1, v1, w, g2, be2, m2, v2)
    out = jax.block_until_ready(out)
    assert out.shape == (N, C_out, L)
    assert jnp.allclose(out, ref, atol=1e-4, rtol=1e-4), "f32 mismatch vs reference"

    # bf16 data path (recommended on v6e/v7x): bf16 MXU operands, f32 accumulate.
    out_bf16 = feature_conv(x.astype(jnp.bfloat16), g1, be1, m1, v1, w, g2, be2, m2, v2)
    out_bf16 = jax.block_until_ready(out_bf16)
    assert out_bf16.shape == (N, C_out, L)
    assert out_bf16.dtype == jnp.bfloat16
    assert jnp.allclose(out_bf16.astype(jnp.float32), ref, atol=1e-1, rtol=1e-1), \
        "bf16 mismatch vs reference"

    print("KERNEL_OK")
</pallas_src>

<mosaic_0001>
module attributes {stable_mosaic.version = 11 : i64} {
  func.func @feature_conv_kernel(%arg0: i32, %arg1: i32, %arg2: memref<32x8xf32, #tpu.memory_space<vmem>>, %arg3: memref<32x1xf32, #tpu.memory_space<vmem>>, %arg4: memref<2x8x512xf32, #tpu.memory_space<vmem>>, %arg5: memref<2x32x512xf32, #tpu.memory_space<vmem>>) attributes {dimension_semantics = [#tpu.dimension_semantics<parallel>, #tpu.dimension_semantics<parallel>], iteration_bounds = array<i64: 4, 1>, scalar_prefetch = 0 : i64, scratch_operands = 0 : i64, tpu.core_type = #tpu.core_type<tc>, window_params = [{pipeline_mode = #tpu.pipeline_mode<synchronous>, transform_indices = @transform_0, window_bounds = array<i64: 32, 8>}, {pipeline_mode = #tpu.pipeline_mode<synchronous>, transform_indices = @transform_1, window_bounds = array<i64: 32, 1>}, {transform_indices = @transform_2, window_bounds = array<i64: 2, 8, 512>}, {transform_indices = @transform_3, window_bounds = array<i64: 2, 32, 512>}]} {
    %c0 = arith.constant 0 : index
    %c0_0 = arith.constant 0 : index
    %0 = vector.load %arg2[%c0, %c0_0] : memref<32x8xf32, #tpu.memory_space<vmem>>, vector<32x8xf32>
    %c0_1 = arith.constant 0 : index
    %c0_2 = arith.constant 0 : index
    %1 = vector.load %arg3[%c0_1, %c0_2] : memref<32x1xf32, #tpu.memory_space<vmem>>, vector<32x1xf32>
    %2 = vector.shape_cast %1 : vector<32x1xf32> to vector<32x1xf32>
    %3 = vector.broadcast %2 : vector<32x1xf32> to vector<32x512xf32>
    %c0_i32 = arith.constant 0 : i32
    %4 = arith.index_cast %c0_i32 : i32 to index
    %c0_3 = arith.constant 0 : index
    %c0_4 = arith.constant 0 : index
    %5 = vector.load %arg4[%4, %c0_3, %c0_4] : memref<2x8x512xf32, #tpu.memory_space<vmem>>, vector<1x8x512xf32>
    %6 = vector.shape_cast %5 : vector<1x8x512xf32> to vector<8x512xf32>
    %cst = arith.constant dense<0.000000e+00> : vector<32x512xf32>
    %7 = tpu.matmul %0, %6, %cst {dimension_numbers = #tpu.dot_dimension_numbers<[1], [0], [0], [1], [0, 0, 1, 1], [], []>, precision = #tpu.contract_precision<fp32>} : vector<32x8xf32>, vector<8x512xf32>, vector<32x512xf32> -> vector<32x512xf32>
    %8 = arith.addf %7, %3 : vector<32x512xf32>
    %cst_5 = arith.constant 0.000000e+00 : f32
    %9 = vector.broadcast %cst_5 : f32 to vector<32x512xf32>
    %10 = arith.maximumf %8, %9 : vector<32x512xf32>
    %11 = arith.index_cast %c0_i32 : i32 to index
    %c0_6 = arith.constant 0 : index
    %c0_7 = arith.constant 0 : index
    %12 = vector.load %arg5[%11, %c0_6, %c0_7] : memref<2x32x512xf32, #tpu.memory_space<vmem>>, vector<1x32x512xf32>
    %13 = vector.shape_cast %12 : vector<1x32x512xf32> to vector<32x512xf32>
    %14 = vector.shape_cast %10 : vector<32x512xf32> to vector<1x32x512xf32>
    tpu.vector_store %arg5[%11, %c0_6, %c0_7], %14 {strides = array<i32>} : memref<2x32x512xf32, #tpu.memory_space<vmem>>, vector<1x32x512xf32>,
    %c1_i32 = arith.constant 1 : i32
    %15 = arith.index_cast %c1_i32 : i32 to index
    %c0_8 = arith.constant 0 : index
    %c0_9 = arith.constant 0 : index
    %16 = vector.load %arg4[%15, %c0_8, %c0_9] : memref<2x8x512xf32, #tpu.memory_space<vmem>>, vector<1x8x512xf32>
    %17 = vector.shape_cast %16 : vector<1x8x512xf32> to vector<8x512xf32>
    %cst_10 = arith.constant dense<0.000000e+00> : vector<32x512xf32>
    %18 = tpu.matmul %0, %17, %cst_10 {dimension_numbers = #tpu.dot_dimension_numbers<[1], [0], [0], [1], [0, 0, 1, 1], [], []>, precision = #tpu.contract_precision<fp32>} : vector<32x8xf32>, vector<8x512xf32>, vector<32x512xf32> -> vector<32x512xf32>
    %19 = arith.addf %18, %3 : vector<32x512xf32>
    %cst_11 = arith.constant 0.000000e+00 : f32
    %20 = vector.broadcast %cst_11 : f32 to vector<32x512xf32>
    %21 = arith.maximumf %19, %20 : vector<32x512xf32>
    %22 = arith.index_cast %c1_i32 : i32 to index
    %c0_12 = arith.constant 0 : index
    %c0_13 = arith.constant 0 : index
    %23 = vector.load %arg5[%22, %c0_12, %c0_13] : memref<2x32x512xf32, #tpu.memory_space<vmem>>, vector<1x32x512xf32>
    %24 = vector.shape_cast %23 : vector<1x32x512xf32> to vector<32x512xf32>
    %25 = vector.shape_cast %21 : vector<32x512xf32> to vector<1x32x512xf32>
    tpu.vector_store %arg5[%22, %c0_12, %c0_13], %25 {strides = array<i32>} : memref<2x32x512xf32, #tpu.memory_space<vmem>>, vector<1x32x512xf32>,
    %c2_i32 = arith.constant 2 : i32
    return
  }
  func.func @transform_0(%arg0: i32, %arg1: i32) -> (i32, i32) {
    %c0_i32 = arith.constant 0 : i32
    %c0_i32_0 = arith.constant 0 : i32
    %c0_i32_1 = arith.constant 0 : i32
    return %c0_i32, %c0_i32_0 : i32, i32
  }
  func.func @transform_1(%arg0: i32, %arg1: i32) -> (i32, i32) {
    %c0_i32 = arith.constant 0 : i32
    %c0_i32_0 = arith.constant 0 : i32
    %c0_i32_1 = arith.constant 0 : i32
    return %c0_i32, %c0_i32_0 : i32, i32
  }
  func.func @transform_2(%arg0: i32, %arg1: i32) -> (i32, i32, i32) {
    %c0_i32 = arith.constant 0 : i32
    %c0_i32_0 = arith.constant 0 : i32
    return %arg0, %c0_i32, %arg1 : i32, i32, i32
  }
  func.func @transform_3(%arg0: i32, %arg1: i32) -> (i32, i32, i32) {
    %c0_i32 = arith.constant 0 : i32
    %c0_i32_0 = arith.constant 0 : i32
    return %arg0, %c0_i32, %arg1 : i32, i32, i32
  }
}

</mosaic_0001>

<llo_original>
// kernel: tpu_custom_call.1
$region0: #{tpu_custom_call.1}
  #allocation0 [shape = 'u32[]', space=smem, size = 0x4, offset = 0x4, fixed_abs, tag = 'smem constant byte address 0x4 - core index']
  #allocation1 [shape = 'u32[144,128]{1,0:T(1,128)}', space=vmem, size = 0x12000, scoped, tag = 'internal scratch']
  %s0 = inlined_call_operand.vmem [shape: f32[32,8], index: 0, kind: input, shape index: {}]
  %s1 = inlined_call_operand.vmem [shape: f32[32,1], index: 1, kind: input, shape index: {}]
  %s2 = inlined_call_operand.hbm [shape: f32[8,8,512], index: 2, kind: input, shape index: {}]
  %s3 = inlined_call_operand.hbm [shape: f32[8,32,512], index: 3, kind: output, shape index: {}]
  %s4 = sld [smem:[#allocation0]]
  $region49: #{tpu_custom_call.1} parent=0
    _
  %s6 = ssub.s32 1, %s4
  %s7 = scalar_select 0, %s6, %s4
  $region1: #{tpu_custom_call.1} parent=0
    #allocation2 [shape = 'u8[65536]{0}', space=vmem, size = 0x10000, scoped, tag = 'input window, operand 2']
    #allocation3 [shape = 's32[2]{0}', space=sflag, size = 0x8, scoped, tag = 'scoped memory for tpu_custom_call.1']
    #allocation4 [shape = 's32[2]{0}', space=sflag, size = 0x8, scoped, tag = 'scoped memory for tpu_custom_call.1']
    #allocation5 [shape = 'u8[262144]{0}', space=vmem, size = 0x40000, scoped, tag = 'output window, operand 0']
    %8 = vsyncpa [#allocation3], 0
    %s9 = scalar_lea.sflag [#allocation3], 1
    %10 = vsyncpa %s9, 0
    %11 = vsyncpa [#allocation4], 0
    %s12 = scalar_lea.sflag [#allocation4], 1
    %13 = vsyncpa %s12, 0
    loop: start=0, step=1, limit=6
    $region2: #{tpu_custom_call.1} parent=1 // loop_pre_header
      _
    $region3: #{tpu_custom_call.1} parent=1 // loop_header
      %s15 = sphi 0, %s19
      %p16 = scmp.ge.s32.totalorder %s15, 6
      %s22 = sphi 0, %s34
      %s23 = sphi 0, %s30
      %s24 = sphi 0, %s22
      %s25 = sphi 0, %s23
      %s26 = sphi 0, %s24
      %s27 = sphi 0, %s25
      %s35 = sphi 0, %s35
      %s37 = sphi 0, %s35
      %s38 = sphi 0, %s37
      %s52 = sphi 0, %s38
      %s56 = sphi 0, %s56
      %s58 = sphi 0, %s56
      %s59 = sphi 0, %s58
      %s73 = sphi 0, %s59
      %s81 = sphi 0, %s83
      %s84 = sphi 0, %s81
      %s85 = sphi 0, %s84
      %s101 = sphi 0, %s85
      %s109 = sphi 0, %s111
      %s112 = sphi 0, %s109
      %s113 = sphi 0, %s112
      %s129 = sphi 0, %s113
    $region4: #{tpu_custom_call.1} parent=1 // loop_header_branch
      %18 = sbr.rel (%p16) target = $region8
    $region5: #{tpu_custom_call.1} parent=1 // loop_body
      %s20 = ssub.s32 %s15, 1
      %s21 = ssub.s32 %s15, 2
      %s28 = sadd.s32 1, %s23
      %p29 = scmp.ge.s32.totalorder %s28, 1
      %s30 = scalar_select %p29, 0, %s28
      %s31 = sadd.s32 1, %s22
      %s32 = scalar_select %p29, %s31, %s22
      %p33 = scmp.ge.s32.totalorder %s32, 4
      %s34 = scalar_select %p33, 0, %s32
      %s36 = sadd.s32 %s35, 1
      %p39 = scmp.eq.s32.totalorder %s15, 3
      %p40 = scmp.ne.s32.totalorder %s35, %s37
      %p41 = scmp.eq.s32.totalorder %s15, 0
      %p42 = por %p40, %p41
      %p43 = scmp.ne.s32.totalorder %s35, %s37
      %p44 = scmp.eq.s32.totalorder %s20, 3
      %p45 = por %p43, %p44
      %p46 = scmp.ne.s32.totalorder %s37, %s38
      %p47 = scmp.eq.s32.totalorder %s20, 0
      %p48 = por %p46, %p47
      %p49 = scmp.ne.s32.totalorder %s37, %s38
      %p50 = scmp.eq.s32.totalorder %s21, 3
      %p51 = por %p49, %p50
      %p53 = scmp.ne.s32.totalorder %s38, %s52
      %p54 = scmp.eq.s32.totalorder %s21, 0
      %p55 = por %p53, %p54
      %s57 = sadd.s32 %s56, 1
      %p60 = scmp.eq.s32.totalorder %s15, 3
      %p61 = scmp.ne.s32.totalorder %s56, %s58
      %p62 = scmp.eq.s32.totalorder %s15, 0
      %p63 = por %p61, %p62
      %p64 = scmp.ne.s32.totalorder %s56, %s58
      %p65 = scmp.eq.s32.totalorder %s20, 3
      %p66 = por %p64, %p65
      %p67 = scmp.ne.s32.totalorder %s58, %s59
      %p68 = scmp.eq.s32.totalorder %s20, 0
      %p69 = por %p67, %p68
      %p70 = scmp.ne.s32.totalorder %s58, %s59
      %p71 = scmp.eq.s32.totalorder %s21, 3
      %p72 = por %p70, %p71
      %p74 = scmp.ne.s32.totalorder %s59, %s73
      %p75 = scmp.eq.s32.totalorder %s21, 0
      %p76 = por %p74, %p75
      %s77 = ssub.s32 %s22, %s34
      %s78 = ssub.s32 %s23, %s30
      %s79 = sor.u32 %s77, %s78
      %p80 = scmp.eq.s32.totalorder %s79, 0
      %s82 = sadd.s32 %s81, 1
      %s83 = scalar_select %p80, %s81, %s82
      %p86 = pneg %p80
      %p87 = scmp.eq.s32.totalorder %s15, 3
      %p88 = por %p86, %p87
      %p89 = scmp.ne.s32.totalorder %s81, %s84
      %p90 = scmp.eq.s32.totalorder %s15, 0
      %p91 = por %p89, %p90
      %p92 = scmp.ne.s32.totalorder %s81, %s84
      %p93 = scmp.eq.s32.totalorder %s20, 3
      %p94 = por %p92, %p93
      %p95 = scmp.ne.s32.totalorder %s84, %s85
      %p96 = scmp.eq.s32.totalorder %s20, 0
      %p97 = por %p95, %p96
      %p98 = scmp.ne.s32.totalorder %s84, %s85
      %p99 = scmp.eq.s32.totalorder %s21, 3
      %p100 = por %p98, %p99
      %p102 = scmp.ne.s32.totalorder %s85, %s101
      %p103 = scmp.eq.s32.totalorder %s21, 0
      %p104 = por %p102, %p103
      %s105 = ssub.s32 %s22, %s34
      %s106 = ssub.s32 %s23, %s30
      %s107 = sor.u32 %s105, %s106
      %p108 = scmp.eq.s32.totalorder %s107, 0
      %s110 = sadd.s32 %s109, 1
      %s111 = scalar_select %p108, %s109, %s110
      %p114 = pneg %p108
      %p115 = scmp.eq.s32.totalorder %s15, 3
      %p116 = por %p114, %p115
      %p117 = scmp.ne.s32.totalorder %s109, %s112
      %p118 = scmp.eq.s32.totalorder %s15, 0
      %p119 = por %p117, %p118
      %p120 = scmp.ne.s32.totalorder %s109, %s112
      %p121 = scmp.eq.s32.totalorder %s20, 3
      %p122 = por %p120, %p121
      %p123 = scmp.ne.s32.totalorder %s112, %s113
      %p124 = scmp.eq.s32.totalorder %s20, 0
      %p125 = por %p123, %p124
      %p126 = scmp.ne.s32.totalorder %s112, %s113
      %p127 = scmp.eq.s32.totalorder %s21, 3
      %p128 = por %p126, %p127
      %p130 = scmp.ne.s32.totalorder %s113, %s129
      %p131 = scmp.eq.s32.totalorder %s21, 0
      %p132 = por %p130, %p131
      %p133 = scmp.le.s32.totalorder 1, %s15
      %p134 = scmp.lt.s32.totalorder %s15, 5
      %p135 = pnand %p133, %p134
      %p136 = pneg %p135
      // Predicated region
      $region9: #{tpu_custom_call.1} parent=5 // pred_check
        _
      $region10: #{tpu_custom_call.1} parent=5 // pred_check_branch
        %138 = sbr.rel (%p135) target = $region12
      $region11: #{tpu_custom_call.1} parent=5 // pred_region
        %s139 = ssub.s32 %s15, 1
        // Predicated region
        $region13: #{tpu_custom_call.1} parent=11 // pred_check
          %p140 = pneg %p48
        $region14: #{tpu_custom_call.1} parent=11 // pred_check_branch
          %142 = sbr.rel (%p140) target = $region16
        $region15: #{tpu_custom_call.1} parent=11 // pred_region
          _
        $region16: #{tpu_custom_call.1} parent=11 // pred_fallthru
          _
        // Predicated region
        $region17: #{tpu_custom_call.1} parent=11 // pred_check
          %p143 = pneg %p69
        $region18: #{tpu_custom_call.1} parent=11 // pred_check_branch
          %145 = sbr.rel (%p143) target = $region20
        $region19: #{tpu_custom_call.1} parent=11 // pred_region
          _
        $region20: #{tpu_custom_call.1} parent=11 // pred_fallthru
          _
      $region12: #{tpu_custom_call.1} parent=5 // pred_fallthru
        _
      %p146 = scmp.lt.s32.totalorder %s15, 4
      // Predicated region
      $region21: #{tpu_custom_call.1} parent=5 // pred_check
        %p147 = pneg %p146
      $region22: #{tpu_custom_call.1} parent=5 // pred_check_branch
        %149 = sbr.rel (%p147) target = $region24
      $region23: #{tpu_custom_call.1} parent=5 // pred_region
        // Predicated region
        $region25: #{tpu_custom_call.1} parent=23 // pred_check
          %p150 = pneg %p91
        $region26: #{tpu_custom_call.1} parent=23 // pred_check_branch
          %152 = sbr.rel (%p150) target = $region28
        $region27: #{tpu_custom_call.1} parent=23 // pred_region
          %s153 = sand.u32 %s81, 1
          %s154 = scalar_lea.sflag [#allocation3], %s153
          %s155 = sand.u32 %s81, 1
          %s156 = smul.addr %s155, 64
          %s157 = scalar_lea.vmem [#allocation2], %s156
          %s158 = smul.u32 2, %s22
          %s159 = smul.u32 4, %s23
          %s161 = ssub.s32 1024, 1024
          %162 = vsyncadd %s154, %s161
          %s163 = smul.addr %s158, 4
          %s164 = sadd.s32 %s159, %s163
          %s165 = smul.addr %s164, 128
          %s166 = scalar_lea.hbm %s2, %s165
          %s167 = sshll.u32 %s157, 4
          %s168 = int_to_ptr.vmem [resolvable:$true] %s167
          %173 = dma.hbm_to_vmem [thread:$0]  %s166, 1024, %s168, %s154, 512, 512, 32
        $region28: #{tpu_custom_call.1} parent=23 // pred_fallthru
          _
      $region24: #{tpu_custom_call.1} parent=5 // pred_fallthru
        _
      %p174 = scmp.le.s32.totalorder 1, %s15
      %p175 = scmp.lt.s32.totalorder %s15, 5
      %p176 = pnand %p174, %p175
      %p177 = pneg %p176
      // Predicated region
      $region29: #{tpu_custom_call.1} parent=5 // pred_check
        _
      $region30: #{tpu_custom_call.1} parent=5 // pred_check_branch
        %179 = sbr.rel (%p176) target = $region32
      $region31: #{tpu_custom_call.1} parent=5 // pred_region
        %s180 = ssub.s32 %s15, 1
        %s181 = sand.u32 %s84, 1
        %s182 = scalar_lea.sflag [#allocation3], %s181
        %s183 = sand.u32 %s84, 1
        %s184 = smul.addr %s183, 64
        %s185 = scalar_lea.vmem [#allocation2], %s184
        // Predicated region
        $region33: #{tpu_custom_call.1} parent=31 // pred_check
          %p186 = pneg %p97
        $region34: #{tpu_custom_call.1} parent=31 // pred_check_branch
          %188 = sbr.rel (%p186) target = $region36
        $region35: #{tpu_custom_call.1} parent=31 // pred_region
          %189 = dma.done %s182, 1024
        $region36: #{tpu_custom_call.1} parent=31 // pred_fallthru
          _
        %p190 = pneg %p48
        %p191 = pneg %p45
        %p192 = pneg %p69
        %p193 = pneg %p66
        %s194 = sand.u32 %s84, 1
        %s195 = scalar_lea.sflag [#allocation3], %s194
        %s196 = sand.u32 %s84, 1
        %s197 = smul.addr %s196, 64
        %s198 = scalar_lea.vmem [#allocation2], %s197
        %p199 = pneg %p97
        %p200 = pneg %p94
        %p201 = pneg %p125
        %p202 = pneg %p122
        %s203 = sand.u32 %s112, 1
        %s204 = scalar_lea.sflag [#allocation4], %s203
        %s205 = sand.u32 %s112, 1
        %s206 = smul.addr %s205, 256
        %s207 = scalar_lea.vmem [#allocation5], %s206
        %s208 = smul.u32 2, %s24
        %s209 = smul.u32 4, %s25
        %s210 = smul.u32 2, %s24
        %s211 = smul.u32 4, %s25
        %v212 = vld [vmem:[%s0] sm:$0xff]
        %v213 = vld [vmem:[%s0 + $0x8] sm:$0xff]
        %v214 = vld [vmem:[%s0 + $0x10] sm:$0xff]
        %v215 = vld [vmem:[%s0 + $0x18] sm:$0xff]
        %v216 = vld [vmem:[%s1] sm:$0xff]
        %v217 = vld [vmem:[%s1 + $0x8] sm:$0xff]
        %v218 = vld [vmem:[%s1 + $0x10] sm:$0xff]
        %v219 = vld [vmem:[%s1 + $0x18] sm:$0xff]
        %221 = vset.pattern.permute.xlu0 0
        %222 = vperm.xlu0 %221, %v216
        %v223 = vpop.permute.xlu0 %222
        %226 = vset.pattern.permute.xlu0 0
        %227 = vperm.xlu0 %226, %v217
        %v228 = vpop.permute.xlu0 %227
        %231 = vset.pattern.permute.xlu0 0
        %232 = vperm.xlu0 %231, %v218
        %v233 = vpop.permute.xlu0 %232
        %236 = vset.pattern.permute.xlu0 0
        %237 = vperm.xlu0 %236, %v219
        %v238 = vpop.permute.xlu0 %237
        %v240 = vld [vmem:[%s185] sm:$0xff]
        %v241 = vld [vmem:[%s185 + $0x8] sm:$0xff]
        %v242 = vld [vmem:[%s185 + $0x10] sm:$0xff]
        %v243 = vld [vmem:[%s185 + $0x18] sm:$0xff]
        %vm244 = vcmask 64512
        %v246 = vsel %vm244, %v212, 0
        %v249 = vsel %vm244, %v213, 0
        %v252 = vsel %vm244, %v214, 0
        %v255 = vsel %vm244, %v215, 0
        %v257 = vand.u32 %v241, 4294901760
        %258 = vmatprep.subr.mxu0 %v257
        %v259 = vand.u32 %v240, 4294901760
        %260 = vmatpush1.msra.mxu0 %v259
        %261 = vmatprep.subr.mxu0 0.0
        %262 = vmatpush1.msra.mxu0 0.0
        %263 = vmatprep.subr.mxu0 0.0
        %264 = vmatpush1.msra.mxu0 0.0
        %265 = vmatprep.subr.mxu0 0.0
        %266 = vmatpush1.msra.mxu0 0.0
        %267 = vmatprep.subr.mxu0 0.0
        %268 = vmatpush1.msra.mxu0 0.0
        %269 = vmatprep.subr.mxu0 0.0
        %270 = vmatpush1.msra.mxu0 0.0
        %271 = vmatprep.subr.mxu0 0.0
        %272 = vmatpush1.msra.mxu0 0.0
        %273 = vmatprep.subr.mxu0 0.0
        %274 = vmatpush1.msra.mxu0 0.0
        %275 = vmatprep.subr.mxu0 0.0
        %276 = vmatpush1.msra.mxu0 0.0
        %277 = vmatprep.subr.mxu0 0.0
        %278 = vmatpush1.msra.mxu0 0.0
        %279 = vmatprep.subr.mxu0 0.0
        %280 = vmatpush1.msra.mxu0 0.0
        %281 = vmatprep.subr.mxu0 0.0
        %282 = vmatpush1.msra.mxu0 0.0
        %283 = vmatprep.subr.mxu0 0.0
        %284 = vmatpush1.msra.mxu0 0.0
        %285 = vmatprep.subr.mxu0 0.0
        %286 = vmatpush1.msra.mxu0 0.0
        %287 = vmatprep.subr.mxu0 0.0
        %288 = vmatpush1.msra.mxu0 0.0
        %289 = vmatprep.subr.mxu0 0.0
        %290 = vmatpush1.msra.mxu0 0.0
        %291 = vmatprep.subr.mxu0 0.0
        %292 = vmatpush1.msra.mxu0 0.0
        %293 = vmatprep.subr.mxu0 0.0
        %294 = vmatpush1.msra.mxu0 0.0
        %295 = vmatprep.subr.mxu0 0.0
        %296 = vmatpush1.msra.mxu0 0.0
        %297 = vmatprep.subr.mxu0 0.0
        %298 = vmatpush1.msra.mxu0 0.0
        %299 = vmatprep.subr.mxu0 0.0
        %300 = vmatpush1.msra.mxu0 0.0
        %301 = vmatprep.subr.mxu0 0.0
        %302 = vmatpush1.msra.mxu0 0.0
        %303 = vmatprep.subr.mxu0 0.0
        %304 = vmatpush1.msra.mxu0 0.0
        %305 = vmatprep.subr.mxu0 0.0
        %306 = vmatpush1.msra.mxu0 0.0
        %307 = vmatprep.subr.mxu0 0.0
        %308 = vmatpush1.msra.mxu0 0.0
        %309 = vmatprep.subr.mxu0 0.0
        %310 = vmatpush1.msra.mxu0 0.0
        %311 = vmatprep.subr.mxu0 0.0
        %312 = vmatpush1.msra.mxu0 0.0
        %313 = vmatprep.subr.mxu0 0.0
        %314 = vmatpush1.msra.mxu0 0.0
        %315 = vmatprep.subr.mxu0 0.0
        %316 = vmatpush1.msra.mxu0 0.0
        %317 = vmatprep.subr.mxu0 0.0
        %318 = vmatpush1.msra.mxu0 0.0
        %319 = vmatprep.subr.mxu0 0.0
        %320 = vmatpush1.msra.mxu0 0.0
        %321 = vmatprep.subr.mxu0 0.0
        %322 = vmatpush1.msra.mxu0 0.0
        %323 = vmatprep.mubr.f32.mxu0 0.0
        %v324 = vand.u32 %v246, 4294901760
        %v325 = vsub.f32 %v246, %v324
        %v326 = vand.u32 %v325, 4294901760
        %v327 = vsub.f32 %v325, %v326
        %v328 = vand.u32 %v327, 4294901760
        %329 = vmatmul.mubr.f32.gmra.mrb[0].mxu0 %v328
        %v330 = vpop.f32.mrb[0].mxu0
        %v331 = vadd.f32 %v223, %v330
        %v332 = vpop.f32.mrb[0].mxu0
        %v333 = vadd.f32 %v223, %v332
        %334 = vmatprep.mubr.f32.mxu0 0.0
        %v335 = vand.u32 %v249, 4294901760
        %v336 = vsub.f32 %v249, %v335
        %v337 = vand.u32 %v336, 4294901760
        %v338 = vsub.f32 %v336, %v337
        %v339 = vand.u32 %v338, 4294901760
        %340 = vmatmul.mubr.f32.gmra.mrb[0].mxu0 %v339
        %v341 = vpop.f32.mrb[0].mxu0
        %v342 = vadd.f32 %v228, %v341
        %v343 = vpop.f32.mrb[0].mxu0
        %v344 = vadd.f32 %v228, %v343
        %345 = vmatprep.mubr.f32.mxu0 0.0
        %v346 = vand.u32 %v252, 4294901760
        %v347 = vsub.f32 %v252, %v346
        %v348 = vand.u32 %v347, 4294901760
        %v349 = vsub.f32 %v347, %v348
        %v350 = vand.u32 %v349, 4294901760
        %351 = vmatmul.mubr.f32.gmra.mrb[0].mxu0 %v350
        %v352 = vpop.f32.mrb[0].mxu0
        %v353 = vadd.f32 %v233, %v352
        %v354 = vpop.f32.mrb[0].mxu0
        %v355 = vadd.f32 %v233, %v354
        %356 = vmatprep.mubr.f32.mxu0 0.0
        %v357 = vand.u32 %v255, 4294901760
        %v358 = vsub.f32 %v255, %v357
        %v359 = vand.u32 %v358, 4294901760
        %v360 = vsub.f32 %v358, %v359
        %v361 = vand.u32 %v360, 4294901760
        %362 = vmatmul.mubr.f32.gmra.mrb[0].mxu0 %v361
        %v363 = vpop.f32.mrb[0].mxu0
        %v364 = vadd.f32 %v238, %v363
        %v365 = vpop.f32.mrb[0].mxu0
        %v366 = vadd.f32 %v238, %v365
        %367 = vdwg.mxu0
        %v368 = vand.u32 %v241, 4294901760
        %v369 = vsub.f32 %v241, %v368
        %v370 = vand.u32 %v369, 4294901760
        %v371 = vsub.f32 %v369, %v370
        %v372 = vand.u32 %v371, 4294901760
        %373 = vmatprep.subr.mxu0 %v372
        %v374 = vand.u32 %v240, 4294901760
        %v375 = vsub.f32 %v240, %v374
        %v376 = vand.u32 %v375, 4294901760
        %v377 = vsub.f32 %v375, %v376
        %v378 = vand.u32 %v377, 4294901760
        %379 = vmatpush1.msra.mxu0 %v378
        %380 = vmatprep.subr.mxu0 0.0
        %381 = vmatpush1.msra.mxu0 0.0
        %382 = vmatprep.subr.mxu0 0.0
        %383 = vmatpush1.msra.mxu0 0.0
        %384 = vmatprep.subr.mxu0 0.0
        %385 = vmatpush1.msra.mxu0 0.0
        %386 = vmatprep.subr.mxu0 0.0
        %387 = vmatpush1.msra.mxu0 0.0
        %388 = vmatprep.subr.mxu0 0.0
        %389 = vmatpush1.msra.mxu0 0.0
        %390 = vmatprep.subr.mxu0 0.0
        %391 = vmatpush1.msra.mxu0 0.0
        %392 = vmatprep.subr.mxu0 0.0
        %393 = vmatpush1.msra.mxu0 0.0
        %394 = vmatprep.subr.mxu0 0.0
        %395 = vmatpush1.msra.mxu0 0.0
        %396 = vmatprep.subr.mxu0 0.0
        %397 = vmatpush1.msra.mxu0 0.0
        %398 = vmatprep.subr.mxu0 0.0
        %399 = vmatpush1.msra.mxu0 0.0
        %400 = vmatprep.subr.mxu0 0.0
        %401 = vmatpush1.msra.mxu0 0.0
        %402 = vmatprep.subr.mxu0 0.0
        %403 = vmatpush1.msra.mxu0 0.0
        %404 = vmatprep.subr.mxu0 0.0
        %405 = vmatpush1.msra.mxu0 0.0
        %406 = vmatprep.subr.mxu0 0.0
        %407 = vmatpush1.msra.mxu0 0.0
        %408 = vmatprep.subr.mxu0 0.0
        %409 = vmatpush1.msra.mxu0 0.0
        %410 = vmatprep.subr.mxu0 0.0
        %411 = vmatpush1.msra.mxu0 0.0
        %412 = vmatprep.subr.mxu0 0.0
        %413 = vmatpush1.msra.mxu0 0.0
        %414 = vmatprep.subr.mxu0 0.0
        %415 = vmatpush1.msra.mxu0 0.0
        %416 = vmatprep.subr.mxu0 0.0
        %417 = vmatpush1.msra.mxu0 0.0
        %418 = vmatprep.subr.mxu0 0.0
        %419 = vmatpush1.msra.mxu0 0.0
        %420 = vmatprep.subr.mxu0 0.0
        %421 = vmatpush1.msra.mxu0 0.0
        %422 = vmatprep.subr.mxu0 0.0
        %423 = vmatpush1.msra.mxu0 0.0
        %424 = vmatprep.subr.mxu0 0.0
        %425 = vmatpush1.msra.mxu0 0.0
        %426 = vmatprep.subr.mxu0 0.0
        %427 = vmatpush1.msra.mxu0 0.0
        %428 = vmatprep.subr.mxu0 0.0
        %429 = vmatpush1.msra.mxu0 0.0
        %430 = vmatprep.subr.mxu0 0.0
        %431 = vmatpush1.msra.mxu0 0.0
        %432 = vmatprep.subr.mxu0 0.0
        %433 = vmatpush1.msra.mxu0 0.0
        %434 = vmatprep.subr.mxu0 0.0
        %435 = vmatpush1.msra.mxu0 0.0
        %436 = vmatprep.subr.mxu0 0.0
        %437 = vmatpush1.msra.mxu0 0.0
        %438 = vmatprep.subr.mxu0 0.0
        %439 = vmatpush1.msra.mxu0 0.0
        %440 = vmatprep.subr.mxu0 0.0
        %441 = vmatpush1.msra.mxu0 0.0
        %442 = vmatprep.mubr.f32.mxu0 0.0
        %v443 = vand.u32 %v246, 4294901760
        %444 = vmatmul.mubr.f32.gmra.mrb[0].mxu0 %v443
        %v445 = vpop.f32.mrb[0].mxu0
        %v446 = vadd.f32 %v331, %v445
        %v447 = vpop.f32.mrb[0].mxu0
        %v448 = vadd.f32 %v333, %v447
        %449 = vmatprep.mubr.f32.mxu0 0.0
        %v450 = vand.u32 %v249, 4294901760
        %451 = vmatmul.mubr.f32.gmra.mrb[0].mxu0 %v450
        %v452 = vpop.f32.mrb[0].mxu0
        %v453 = vadd.f32 %v342, %v452
        %v454 = vpop.f32.mrb[0].mxu0
        %v455 = vadd.f32 %v344, %v454
        %456 = vmatprep.mubr.f32.mxu0 0.0
        %v457 = vand.u32 %v252, 4294901760
        %458 = vmatmul.mubr.f32.gmra.mrb[0].mxu0 %v457
        %v459 = vpop.f32.mrb[0].mxu0
        %v460 = vadd.f32 %v353, %v459
        %v461 = vpop.f32.mrb[0].mxu0
        %v462 = vadd.f32 %v355, %v461
        %463 = vmatprep.mubr.f32.mxu0 0.0
        %v464 = vand.u32 %v255, 4294901760
        %465 = vmatmul.mubr.f32.gmra.mrb[0].mxu0 %v464
        %v466 = vpop.f32.mrb[0].mxu0
        %v467 = vadd.f32 %v364, %v466
        %v468 = vpop.f32.mrb[0].mxu0
        %v469 = vadd.f32 %v366, %v468
        %470 = vdwg.mxu0
        %v471 = vand.u32 %v241, 4294901760
        %v472 = vsub.f32 %v241, %v471
        %473 = vmatprep.subr.mxu0 %v472
        %v474 = vand.u32 %v240, 4294901760
        %v475 = vsub.f32 %v240, %v474
        %476 = vmatpush1.msra.mxu0 %v475
        %477 = vmatprep.subr.mxu0 0.0
        %478 = vmatpush1.msra.mxu0 0.0
        %479 = vmatprep.subr.mxu0 0.0
        %480 = vmatpush1.msra.mxu0 0.0
        %481 = vmatprep.subr.mxu0 0.0
        %482 = vmatpush1.msra.mxu0 0.0
        %483 = vmatprep.subr.mxu0 0.0
        %484 = vmatpush1.msra.mxu0 0.0
        %485 = vmatprep.subr.mxu0 0.0
        %486 = vmatpush1.msra.mxu0 0.0
        %487 = vmatprep.subr.mxu0 0.0
        %488 = vmatpush1.msra.mxu0 0.0
        %489 = vmatprep.subr.mxu0 0.0
        %490 = vmatpush1.msra.mxu0 0.0
        %491 = vmatprep.subr.mxu0 0.0
        %492 = vmatpush1.msra.mxu0 0.0
        %493 = vmatprep.subr.mxu0 0.0
        %494 = vmatpush1.msra.mxu0 0.0
        %495 = vmatprep.subr.mxu0 0.0
        %496 = vmatpush1.msra.mxu0 0.0
        %497 = vmatprep.subr.mxu0 0.0
        %498 = vmatpush1.msra.mxu0 0.0
        %499 = vmatprep.subr.mxu0 0.0
        %500 = vmatpush1.msra.mxu0 0.0
        %501 = vmatprep.subr.mxu0 0.0
        %502 = vmatpush1.msra.mxu0 0.0
        %503 = vmatprep.subr.mxu0 0.0
        %504 = vmatpush1.msra.mxu0 0.0
        %505 = vmatprep.subr.mxu0 0.0
        %506 = vmatpush1.msra.mxu0 0.0
        %507 = vmatprep.subr.mxu0 0.0
        %508 = vmatpush1.msra.mxu0 0.0
        %509 = vmatprep.subr.mxu0 0.0
        %510 = vmatpush1.msra.mxu0 0.0
        %511 = vmatprep.subr.mxu0 0.0
        %512 = vmatpush1.msra.mxu0 0.0
        %513 = vmatprep.subr.mxu0 0.0
        %514 = vmatpush1.msra.mxu0 0.0
        %515 = vmatprep.subr.mxu0 0.0
        %516 = vmatpush1.msra.mxu0 0.0
        %517 = vmatprep.subr.mxu0 0.0
        %518 = vmatpush1.msra.mxu0 0.0
        %519 = vmatprep.subr.mxu0 0.0
        %520 = vmatpush1.msra.mxu0 0.0
        %521 = vmatprep.subr.mxu0 0.0
        %522 = vmatpush1.msra.mxu0 0.0
        %523 = vmatprep.subr.mxu0 0.0
        %524 = vmatpush1.msra.mxu0 0.0
        %525 = vmatprep.subr.mxu0 0.0
        %526 = vmatpush1.msra.mxu0 0.0
        %527 = vmatprep.subr.mxu0 0.0
        %528 = vmatpush1.msra.mxu0 0.0
        %529 = vmatprep.subr.mxu0 0.0
        %530 = vmatpush1.msra.mxu0 0.0
        %531 = vmatprep.subr.mxu0 0.0
        %532 = vmatpush1.msra.mxu0 0.0
        %533 = vmatprep.subr.mxu0 0.0
        %534 = vmatpush1.msra.mxu0 0.0
        %535 = vmatprep.subr.mxu0 0.0
        %536 = vmatpush1.msra.mxu0 0.0
        %537 = vmatprep.subr.mxu0 0.0
        %538 = vmatpush1.msra.mxu0 0.0
        %539 = vmatprep.mubr.f32.mxu0 0.0
        %v540 = vand.u32 %v246, 4294901760
        %v541 = vsub.f32 %v246, %v540
        %542 = vmatmul.mubr.f32.gmra.mrb[0].mxu0 %v541
        %v543 = vpop.f32.mrb[0].mxu0
        %v544 = vadd.f32 %v446, %v543
        %v545 = vpop.f32.mrb[0].mxu0
        %v546 = vadd.f32 %v448, %v545
        %547 = vmatprep.mubr.f32.mxu0 0.0
        %v548 = vand.u32 %v249, 4294901760
        %v549 = vsub.f32 %v249, %v548
        %550 = vmatmul.mubr.f32.gmra.mrb[0].mxu0 %v549
        %v551 = vpop.f32.mrb[0].mxu0
        %v552 = vadd.f32 %v453, %v551
        %v553 = vpop.f32.mrb[0].mxu0
        %v554 = vadd.f32 %v455, %v553
        %555 = vmatprep.mubr.f32.mxu0 0.0
        %v556 = vand.u32 %v252, 4294901760
        %v557 = vsub.f32 %v252, %v556
        %558 = vmatmul.mubr.f32.gmra.mrb[0].mxu0 %v557
        %v559 = vpop.f32.mrb[0].mxu0
        %v560 = vadd.f32 %v460, %v559
        %v561 = vpop.f32.mrb[0].mxu0
        %v562 = vadd.f32 %v462, %v561
        %563 = vmatprep.mubr.f32.mxu0 0.0
        %v564 = vand.u32 %v255, 4294901760
        %v565 = vsub.f32 %v255, %v564
        %566 = vmatmul.mubr.f32.gmra.mrb[0].mxu0 %v565
        %v567 = vpop.f32.mrb[0].mxu0
        %v568 = vadd.f32 %v467, %v567
        %v569 = vpop.f32.mrb[0].mxu0
        %v570 = vadd.f32 %v469, %v569
        %571 = vdwg.mxu0
        %v572 = vand.u32 %v241, 4294901760
        %573 = vmatprep.subr.mxu0 %v572
        %v574 = vand.u32 %v240, 4294901760
        %575 = vmatpush1.msra.mxu0 %v574
        %576 = vmatprep.subr.mxu0 0.0
        %577 = vmatpush1.msra.mxu0 0.0
        %578 = vmatprep.subr.mxu0 0.0
        %579 = vmatpush1.msra.mxu0 0.0
        %580 = vmatprep.subr.mxu0 0.0
        %581 = vmatpush1.msra.mxu0 0.0
        %582 = vmatprep.subr.mxu0 0.0
        %583 = vmatpush1.msra.mxu0 0.0
        %584 = vmatprep.subr.mxu0 0.0
        %585 = vmatpush1.msra.mxu0 0.0
        %586 = vmatprep.subr.mxu0 0.0
        %587 = vmatpush1.msra.mxu0 0.0
        %588 = vmatprep.subr.mxu0 0.0
        %589 = vmatpush1.msra.mxu0 0.0
        %590 = vmatprep.subr.mxu0 0.0
        %591 = vmatpush1.msra.mxu0 0.0
        %592 = vmatprep.subr.mxu0 0.0
        %593 = vmatpush1.msra.mxu0 0.0
        %594 = vmatprep.subr.mxu0 0.0
        %595 = vmatpush1.msra.mxu0 0.0
        %596 = vmatprep.subr.mxu0 0.0
        %597 = vmatpush1.msra.mxu0 0.0
        %598 = vmatprep.subr.mxu0 0.0
        %599 = vmatpush1.msra.mxu0 0.0
        %600 = vmatprep.subr.mxu0 0.0
        %601 = vmatpush1.msra.mxu0 0.0
        %602 = vmatprep.subr.mxu0 0.0
        %603 = vmatpush1.msra.mxu0 0.0
        %604 = vmatprep.subr.mxu0 0.0
        %605 = vmatpush1.msra.mxu0 0.0
        %606 = vmatprep.subr.mxu0 0.0
        %607 = vmatpush1.msra.mxu0 0.0
        %608 = vmatprep.subr.mxu0 0.0
        %609 = vmatpush1.msra.mxu0 0.0
        %610 = vmatprep.subr.mxu0 0.0
        %611 = vmatpush1.msra.mxu0 0.0
        %612 = vmatprep.subr.mxu0 0.0
        %613 = vmatpush1.msra.mxu0 0.0
        %614 = vmatprep.subr.mxu0 0.0
        %615 = vmatpush1.msra.mxu0 0.0
        %616 = vmatprep.subr.mxu0 0.0
        %617 = vmatpush1.msra.mxu0 0.0
        %618 = vmatprep.subr.mxu0 0.0
        %619 = vmatpush1.msra.mxu0 0.0
        %620 = vmatprep.subr.mxu0 0.0
        %621 = vmatpush1.msra.mxu0 0.0
        %622 = vmatprep.subr.mxu0 0.0
        %623 = vmatpush1.msra.mxu0 0.0
        %624 = vmatprep.subr.mxu0 0.0
        %625 = vmatpush1.msra.mxu0 0.0
        %626 = vmatprep.subr.mxu0 0.0
        %627 = vmatpush1.msra.mxu0 0.0
        %628 = vmatprep.subr.mxu0 0.0
        %629 = vmatpush1.msra.mxu0 0.0
        %630 = vmatprep.subr.mxu0 0.0
        %631 = vmatpush1.msra.mxu0 0.0
        %632 = vmatprep.subr.mxu0 0.0
        %633 = vmatpush1.msra.mxu0 0.0
        %634 = vmatprep.subr.mxu0 0.0
        %635 = vmatpush1.msra.mxu0 0.0
        %636 = vmatprep.subr.mxu0 0.0
        %637 = vmatpush1.msra.mxu0 0.0
        %638 = vmatprep.mubr.f32.mxu0 0.0
        %v639 = vand.u32 %v246, 4294901760
        %v640 = vsub.f32 %v246, %v639
        %v641 = vand.u32 %v640, 4294901760
        %642 = vmatmul.mubr.f32.gmra.mrb[0].mxu0 %v641
        %v643 = vpop.f32.mrb[0].mxu0
        %v644 = vadd.f32 %v544, %v643
        %v645 = vpop.f32.mrb[0].mxu0
        %v646 = vadd.f32 %v546, %v645
        %647 = vmatprep.mubr.f32.mxu0 0.0
        %v648 = vand.u32 %v249, 4294901760
        %v649 = vsub.f32 %v249, %v648
        %v650 = vand.u32 %v649, 4294901760
        %651 = vmatmul.mubr.f32.gmra.mrb[0].mxu0 %v650
        %v652 = vpop.f32.mrb[0].mxu0
        %v653 = vadd.f32 %v552, %v652
        %v654 = vpop.f32.mrb[0].mxu0
        %v655 = vadd.f32 %v554, %v654
        %656 = vmatprep.mubr.f32.mxu0 0.0
        %v657 = vand.u32 %v252, 4294901760
        %v658 = vsub.f32 %v252, %v657
        %v659 = vand.u32 %v658, 4294901760
        %660 = vmatmul.mubr.f32.gmra.mrb[0].mxu0 %v659
        %v661 = vpop.f32.mrb[0].mxu0
        %v662 = vadd.f32 %v560, %v661
        %v663 = vpop.f32.mrb[0].mxu0
        %v664 = vadd.f32 %v562, %v663
        %665 = vmatprep.mubr.f32.mxu0 0.0
        %v666 = vand.u32 %v255, 4294901760
        %v667 = vsub.f32 %v255, %v666
        %v668 = vand.u32 %v667, 4294901760
        %669 = vmatmul.mubr.f32.gmra.mrb[0].mxu0 %v668
        %v670 = vpop.f32.mrb[0].mxu0
        %v671 = vadd.f32 %v568, %v670
        %v672 = vpop.f32.mrb[0].mxu0
        %v673 = vadd.f32 %v570, %v672
        %674 = vdwg.mxu0
        %v675 = vand.u32 %v241, 4294901760
        %v676 = vsub.f32 %v241, %v675
        %v677 = vand.u32 %v676, 4294901760
        %678 = vmatprep.subr.mxu0 %v677
        %v679 = vand.u32 %v240, 4294901760
        %v680 = vsub.f32 %v240, %v679
        %v681 = vand.u32 %v680, 4294901760
        %682 = vmatpush1.msra.mxu0 %v681
        %683 = vmatprep.subr.mxu0 0.0
        %684 = vmatpush1.msra.mxu0 0.0
        %685 = vmatprep.subr.mxu0 0.0
        %686 = vmatpush1.msra.mxu0 0.0
        %687 = vmatprep.subr.mxu0 0.0
        %688 = vmatpush1.msra.mxu0 0.0
        %689 = vmatprep.subr.mxu0 0.0
        %690 = vmatpush1.msra.mxu0 0.0
        %691 = vmatprep.subr.mxu0 0.0
        %692 = vmatpush1.msra.mxu0 0.0
        %693 = vmatprep.subr.mxu0 0.0
        %694 = vmatpush1.msra.mxu0 0.0
        %695 = vmatprep.subr.mxu0 0.0
        %696 = vmatpush1.msra.mxu0 0.0
        %697 = vmatprep.subr.mxu0 0.0
        %698 = vmatpush1.msra.mxu0 0.0
        %699 = vmatprep.subr.mxu0 0.0
        %700 = vmatpush1.msra.mxu0 0.0
        %701 = vmatprep.subr.mxu0 0.0
        %702 = vmatpush1.msra.mxu0 0.0
        %703 = vmatprep.subr.mxu0 0.0
        %704 = vmatpush1.msra.mxu0 0.0
        %705 = vmatprep.subr.mxu0 0.0
        %706 = vmatpush1.msra.mxu0 0.0
        %707 = vmatprep.subr.mxu0 0.0
        %708 = vmatpush1.msra.mxu0 0.0
        %709 = vmatprep.subr.mxu0 0.0
        %710 = vmatpush1.msra.mxu0 0.0
        %711 = vmatprep.subr.mxu0 0.0
        %712 = vmatpush1.msra.mxu0 0.0
        %713 = vmatprep.subr.mxu0 0.0
        %714 = vmatpush1.msra.mxu0 0.0
        %715 = vmatprep.subr.mxu0 0.0
        %716 = vmatpush1.msra.mxu0 0.0
        %717 = vmatprep.subr.mxu0 0.0
        %718 = vmatpush1.msra.mxu0 0.0
        %719 = vmatprep.subr.mxu0 0.0
        %720 = vmatpush1.msra.mxu0 0.0
        %721 = vmatprep.subr.mxu0 0.0
        %722 = vmatpush1.msra.mxu0 0.0
        %723 = vmatprep.subr.mxu0 0.0
        %724 = vmatpush1.msra.mxu0 0.0
        %725 = vmatprep.subr.mxu0 0.0
        %726 = vmatpush1.msra.mxu0 0.0
        %727 = vmatprep.subr.mxu0 0.0
        %728 = vmatpush1.msra.mxu0 0.0
        %729 = vmatprep.subr.mxu0 0.0
        %730 = vmatpush1.msra.mxu0 0.0
        %731 = vmatprep.subr.mxu0 0.0
        %732 = vmatpush1.msra.mxu0 0.0
        %733 = vmatprep.subr.mxu0 0.0
        %734 = vmatpush1.msra.mxu0 0.0
        %735 = vmatprep.subr.mxu0 0.0
        %736 = vmatpush1.msra.mxu0 0.0
        %737 = vmatprep.subr.mxu0 0.0
        %738 = vmatpush1.msra.mxu0 0.0
        %739 = vmatprep.subr.mxu0 0.0
        %740 = vmatpush1.msra.mxu0 0.0
        %741 = vmatprep.subr.mxu0 0.0
        %742 = vmatpush1.msra.mxu0 0.0
        %743 = vmatprep.subr.mxu0 0.0
        %744 = vmatpush1.msra.mxu0 0.0
        %745 = vmatprep.mubr.f32.mxu0 0.0
        %v746 = vand.u32 %v246, 4294901760
        %747 = vmatmul.mubr.f32.gmra.mrb[0].mxu0 %v746
        %v748 = vpop.f32.mrb[0].mxu0
        %v749 = vadd.f32 %v644, %v748
        %v750 = vpop.f32.mrb[0].mxu0
        %v751 = vadd.f32 %v646, %v750
        %752 = vmatprep.mubr.f32.mxu0 0.0
        %v753 = vand.u32 %v249, 4294901760
        %754 = vmatmul.mubr.f32.gmra.mrb[0].mxu0 %v753
        %v755 = vpop.f32.mrb[0].mxu0
        %v756 = vadd.f32 %v653, %v755
        %v757 = vpop.f32.mrb[0].mxu0
        %v758 = vadd.f32 %v655, %v757
        %759 = vmatprep.mubr.f32.mxu0 0.0
        %v760 = vand.u32 %v252, 4294901760
        %761 = vmatmul.mubr.f32.gmra.mrb[0].mxu0 %v760
        %v762 = vpop.f32.mrb[0].mxu0
        %v763 = vadd.f32 %v662, %v762
        %v764 = vpop.f32.mrb[0].mxu0
        %v765 = vadd.f32 %v664, %v764
        %766 = vmatprep.mubr.f32.mxu0 0.0
        %v767 = vand.u32 %v255, 4294901760
        %768 = vmatmul.mubr.f32.gmra.mrb[0].mxu0 %v767
        %v769 = vpop.f32.mrb[0].mxu0
        %v770 = vadd.f32 %v671, %v769
        %v771 = vpop.f32.mrb[0].mxu0
        %v772 = vadd.f32 %v673, %v771
        %773 = vdwg.mxu0
        %v774 = vand.u32 %v241, 4294901760
        %775 = vmatprep.subr.mxu0 %v774
        %v776 = vand.u32 %v240, 4294901760
        %777 = vmatpush1.msra.mxu0 %v776
        %778 = vmatprep.subr.mxu0 0.0
        %779 = vmatpush1.msra.mxu0 0.0
        %780 = vmatprep.subr.mxu0 0.0
        %781 = vmatpush1.msra.mxu0 0.0
        %782 = vmatprep.subr.mxu0 0.0
        %783 = vmatpush1.msra.mxu0 0.0
        %784 = vmatprep.subr.mxu0 0.0
        %785 = vmatpush1.msra.mxu0 0.0
        %786 = vmatprep.subr.mxu0 0.0
        %787 = vmatpush1.msra.mxu0 0.0
        %788 = vmatprep.subr.mxu0 0.0
        %789 = vmatpush1.msra.mxu0 0.0
        %790 = vmatprep.subr.mxu0 0.0
        %791 = vmatpush1.msra.mxu0 0.0
        %792 = vmatprep.subr.mxu0 0.0
        %793 = vmatpush1.msra.mxu0 0.0
        %794 = vmatprep.subr.mxu0 0.0
        %795 = vmatpush1.msra.mxu0 0.0
        %796 = vmatprep.subr.mxu0 0.0
        %797 = vmatpush1.msra.mxu0 0.0
        %798 = vmatprep.subr.mxu0 0.0
        %799 = vmatpush1.msra.mxu0 0.0
        %800 = vmatprep.subr.mxu0 0.0
        %801 = vmatpush1.msra.mxu0 0.0
        %802 = vmatprep.subr.mxu0 0.0
        %803 = vmatpush1.msra.mxu0 0.0
        %804 = vmatprep.subr.mxu0 0.0
        %805 = vmatpush1.msra.mxu0 0.0
        %806 = vmatprep.subr.mxu0 0.0
        %807 = vmatpush1.msra.mxu0 0.0
        %808 = vmatprep.subr.mxu0 0.0
        %809 = vmatpush1.msra.mxu0 0.0
        %810 = vmatprep.subr.mxu0 0.0
        %811 = vmatpush1.msra.mxu0 0.0
        %812 = vmatprep.subr.mxu0 0.0
        %813 = vmatpush1.msra.mxu0 0.0
        %814 = vmatprep.subr.mxu0 0.0
        %815 = vmatpush1.msra.mxu0 0.0
        %816 = vmatprep.subr.mxu0 0.0
        %817 = vmatpush1.msra.mxu0 0.0
        %818 = vmatprep.subr.mxu0 0.0
        %819 = vmatpush1.msra.mxu0 0.0
        %820 = vmatprep.subr.mxu0 0.0
        %821 = vmatpush1.msra.mxu0 0.0
        %822 = vmatprep.subr.mxu0 0.0
        %823 = vmatpush1.msra.mxu0 0.0
        %824 = vmatprep.subr.mxu0 0.0
        %825 = vmatpush1.msra.mxu0 0.0
        %826 = vmatprep.subr.mxu0 0.0
        %827 = vmatpush1.msra.mxu0 0.0
        %828 = vmatprep.subr.mxu0 0.0
        %829 = vmatpush1.msra.mxu0 0.0
        %830 = vmatprep.subr.mxu0 0.0
        %831 = vmatpush1.msra.mxu0 0.0
        %832 = vmatprep.subr.mxu0 0.0
        %833 = vmatpush1.msra.mxu0 0.0
        %834 = vmatprep.subr.mxu0 0.0
        %835 = vmatpush1.msra.mxu0 0.0
        %836 = vmatprep.subr.mxu0 0.0
        %837 = vmatpush1.msra.mxu0 0.0
        %838 = vmatprep.subr.mxu0 0.0
        %839 = vmatpush1.msra.mxu0 0.0
        %840 = vmatprep.mubr.f32.mxu0 0.0
        %v841 = vand.u32 %v246, 4294901760
        %842 = vmatmul.mubr.f32.gmra.mrb[0].mxu0 %v841
        %v843 = vpop.f32.mrb[0].mxu0
        %v844 = vadd.f32 %v749, %v843
        %v845 = vpop.f32.mrb[0].mxu0
        %v846 = vadd.f32 %v751, %v845
        %847 = vmatprep.mubr.f32.mxu0 0.0
        %v848 = vand.u32 %v249, 4294901760
        %849 = vmatmul.mubr.f32.gmra.mrb[0].mxu0 %v848
        %v850 = vpop.f32.mrb[0].mxu0
        %v851 = vadd.f32 %v756, %v850
        %v852 = vpop.f32.mrb[0].mxu0
        %v853 = vadd.f32 %v758, %v852
        %854 = vmatprep.mubr.f32.mxu0 0.0
        %v855 = vand.u32 %v252, 4294901760
        %856 = vmatmul.mubr.f32.gmra.mrb[0].mxu0 %v855
        %v857 = vpop.f32.mrb[0].mxu0
        %v858 = vadd.f32 %v763, %v857
        %v859 = vpop.f32.mrb[0].mxu0
        %v860 = vadd.f32 %v765, %v859
        %861 = vmatprep.mubr.f32.mxu0 0.0
        %v862 = vand.u32 %v255, 4294901760
        %863 = vmatmul.mubr.f32.gmra.mrb[0].mxu0 %v862
        %v864 = vpop.f32.mrb[0].mxu0
        %v865 = vadd.f32 %v770, %v864
        %v866 = vpop.f32.mrb[0].mxu0
        %v867 = vadd.f32 %v772, %v866
        %868 = vdwg.mxu0
        %v869 = vand.u32 %v243, 4294901760
        %870 = vmatprep.subr.mxu0 %v869
        %v871 = vand.u32 %v242, 4294901760
        %872 = vmatpush1.msra.mxu0 %v871
        %873 = vmatprep.subr.mxu0 0.0
        %874 = vmatpush1.msra.mxu0 0.0
        %875 = vmatprep.subr.mxu0 0.0
        %876 = vmatpush1.msra.mxu0 0.0
        %877 = vmatprep.subr.mxu0 0.0
        %878 = vmatpush1.msra.mxu0 0.0
        %879 = vmatprep.subr.mxu0 0.0
        %880 = vmatpush1.msra.mxu0 0.0
        %881 = vmatprep.subr.mxu0 0.0
        %882 = vmatpush1.msra.mxu0 0.0
        %883 = vmatprep.subr.mxu0 0.0
        %884 = vmatpush1.msra.mxu0 0.0
        %885 = vmatprep.subr.mxu0 0.0
        %886 = vmatpush1.msra.mxu0 0.0
        %887 = vmatprep.subr.mxu0 0.0
        %888 = vmatpush1.msra.mxu0 0.0
        %889 = vmatprep.subr.mxu0 0.0
        %890 = vmatpush1.msra.mxu0 0.0
        %891 = vmatprep.subr.mxu0 0.0
        %892 = vmatpush1.msra.mxu0 0.0
        %893 = vmatprep.subr.mxu0 0.0
        %894 = vmatpush1.msra.mxu0 0.0
        %895 = vmatprep.subr.mxu0 0.0
        %896 = vmatpush1.msra.mxu0 0.0
        %897 = vmatprep.subr.mxu0 0.0
        %898 = vmatpush1.msra.mxu0 0.0
        %899 = vmatprep.subr.mxu0 0.0
        %900 = vmatpush1.msra.mxu0 0.0
        %901 = vmatprep.subr.mxu0 0.0
        %902 = vmatpush1.msra.mxu0 0.0
        %903 = vmatprep.subr.mxu0 0.0
        %904 = vmatpush1.msra.mxu0 0.0
        %905 = vmatprep.subr.mxu0 0.0
        %906 = vmatpush1.msra.mxu0 0.0
        %907 = vmatprep.subr.mxu0 0.0
        %908 = vmatpush1.msra.mxu0 0.0
        %909 = vmatprep.subr.mxu0 0.0
        %910 = vmatpush1.msra.mxu0 0.0
        %911 = vmatprep.subr.mxu0 0.0
        %912 = vmatpush1.msra.mxu0 0.0
        %913 = vmatprep.subr.mxu0 0.0
        %914 = vmatpush1.msra.mxu0 0.0
        %915 = vmatprep.subr.mxu0 0.0
        %916 = vmatpush1.msra.mxu0 0.0
        %917 = vmatprep.subr.mxu0 0.0
        %918 = vmatpush1.msra.mxu0 0.0
        %919 = vmatprep.subr.mxu0 0.0
        %920 = vmatpush1.msra.mxu0 0.0
        %921 = vmatprep.subr.mxu0 0.0
        %922 = vmatpush1.msra.mxu0 0.0
        %923 = vmatprep.subr.mxu0 0.0
        %924 = vmatpush1.msra.mxu0 0.0
        %925 = vmatprep.subr.mxu0 0.0
        %926 = vmatpush1.msra.mxu0 0.0
        %927 = vmatprep.subr.mxu0 0.0
        %928 = vmatpush1.msra.mxu0 0.0
        %929 = vmatprep.subr.mxu0 0.0
        %930 = vmatpush1.msra.mxu0 0.0
        %931 = vmatprep.subr.mxu0 0.0
        %932 = vmatpush1.msra.mxu0 0.0
        %933 = vmatprep.subr.mxu0 0.0
        %934 = vmatpush1.msra.mxu0 0.0
        %935 = vmatprep.mubr.f32.mxu0 0.0
        %v936 = vand.u32 %v246, 4294901760
        %v937 = vsub.f32 %v246, %v936
        %v938 = vand.u32 %v937, 4294901760
        %v939 = vsub.f32 %v937, %v938
        %v940 = vand.u32 %v939, 4294901760
        %941 = vmatmul.mubr.f32.gmra.mrb[0].mxu0 %v940
        %v942 = vpop.f32.mrb[0].mxu0
        %v943 = vadd.f32 %v223, %v942
        %v944 = vpop.f32.mrb[0].mxu0
        %v945 = vadd.f32 %v223, %v944
        %946 = vmatprep.mubr.f32.mxu0 0.0
        %v947 = vand.u32 %v249, 4294901760
        %v948 = vsub.f32 %v249, %v947
        %v949 = vand.u32 %v948, 4294901760
        %v950 = vsub.f32 %v948, %v949
        %v951 = vand.u32 %v950, 4294901760
        %952 = vmatmul.mubr.f32.gmra.mrb[0].mxu0 %v951
        %v953 = vpop.f32.mrb[0].mxu0
        %v954 = vadd.f32 %v228, %v953
        %v955 = vpop.f32.mrb[0].mxu0
        %v956 = vadd.f32 %v228, %v955
        %957 = vmatprep.mubr.f32.mxu0 0.0
        %v958 = vand.u32 %v252, 4294901760
        %v959 = vsub.f32 %v252, %v958
        %v960 = vand.u32 %v959, 4294901760
        %v961 = vsub.f32 %v959, %v960
        %v962 = vand.u32 %v961, 4294901760
        %963 = vmatmul.mubr.f32.gmra.mrb[0].mxu0 %v962
        %v964 = vpop.f32.mrb[0].mxu0
        %v965 = vadd.f32 %v233, %v964
        %v966 = vpop.f32.mrb[0].mxu0
        %v967 = vadd.f32 %v233, %v966
        %968 = vmatprep.mubr.f32.mxu0 0.0
        %v969 = vand.u32 %v255, 4294901760
        %v970 = vsub.f32 %v255, %v969
        %v971 = vand.u32 %v970, 4294901760
        %v972 = vsub.f32 %v970, %v971
        %v973 = vand.u32 %v972, 4294901760
        %974 = vmatmul.mubr.f32.gmra.mrb[0].mxu0 %v973
        %v975 = vpop.f32.mrb[0].mxu0
        %v976 = vadd.f32 %v238, %v975
        %v977 = vpop.f32.mrb[0].mxu0
        %v978 = vadd.f32 %v238, %v977
        %979 = vdwg.mxu0
        %v980 = vand.u32 %v243, 4294901760
        %v981 = vsub.f32 %v243, %v980
        %v982 = vand.u32 %v981, 4294901760
        %v983 = vsub.f32 %v981, %v982
        %v984 = vand.u32 %v983, 4294901760
        %985 = vmatprep.subr.mxu0 %v984
        %v986 = vand.u32 %v242, 4294901760
        %v987 = vsub.f32 %v242, %v986
        %v988 = vand.u32 %v987, 4294901760
        %v989 = vsub.f32 %v987, %v988
        %v990 = vand.u32 %v989, 4294901760
        %991 = vmatpush1.msra.mxu0 %v990
        %992 = vmatprep.subr.mxu0 0.0
        %993 = vmatpush1.msra.mxu0 0.0
        %994 = vmatprep.subr.mxu0 0.0
        %995 = vmatpush1.msra.mxu0 0.0
        %996 = vmatprep.subr.mxu0 0.0
        %997 = vmatpush1.msra.mxu0 0.0
        %998 = vmatprep.subr.mxu0 0.0
        %999 = vmatpush1.msra.mxu0 0.0
        %1000 = vmatprep.subr.mxu0 0.0
        %1001 = vmatpush1.msra.mxu0 0.0
        %1002 = vmatprep.subr.mxu0 0.0
        %1003 = vmatpush1.msra.mxu0 0.0
        %1004 = vmatprep.subr.mxu0 0.0
        %1005 = vmatpush1.msra.mxu0 0.0
        %1006 = vmatprep.subr.mxu0 0.0
        %1007 = vmatpush1.msra.mxu0 0.0
        %1008 = vmatprep.subr.mxu0 0.0
        %1009 = vmatpush1.msra.mxu0 0.0
        %1010 = vmatprep.subr.mxu0 0.0
        %1011 = vmatpush1.msra.mxu0 0.0
        %1012 = vmatprep.subr.mxu0 0.0
        %1013 = vmatpush1.msra.mxu0 0.0
        %1014 = vmatprep.subr.mxu0 0.0
        %1015 = vmatpush1.msra.mxu0 0.0
        %1016 = vmatprep.subr.mxu0 0.0
        %1017 = vmatpush1.msra.mxu0 0.0
        %1018 = vmatprep.subr.mxu0 0.0
        %1019 = vmatpush1.msra.mxu0 0.0
        %1020 = vmatprep.subr.mxu0 0.0
        %1021 = vmatpush1.msra.mxu0 0.0
        %1022 = vmatprep.subr.mxu0 0.0
        %1023 = vmatpush1.msra.mxu0 0.0
        %1024 = vmatprep.subr.mxu0 0.0
        %1025 = vmatpush1.msra.mxu0 0.0
        %1026 = vmatprep.subr.mxu0 0.0
        %1027 = vmatpush1.msra.mxu0 0.0
        %1028 = vmatprep.subr.mxu0 0.0
        %1029 = vmatpush1.msra.mxu0 0.0
        %1030 = vmatprep.subr.mxu0 0.0
        %1031 = vmatpush1.msra.mxu0 0.0
        %1032 = vmatprep.subr.mxu0 0.0
        %1033 = vmatpush1.msra.mxu0 0.0
        %1034 = vmatprep.subr.mxu0 0.0
        %1035 = vmatpush1.msra.mxu0 0.0
        %1036 = vmatprep.subr.mxu0 0.0
        %1037 = vmatpush1.msra.mxu0 0.0
        %1038 = vmatprep.subr.mxu0 0.0
        %1039 = vmatpush1.msra.mxu0 0.0
        %1040 = vmatprep.subr.mxu0 0.0
        %1041 = vmatpush1.msra.mxu0 0.0
        %1042 = vmatprep.subr.mxu0 0.0
        %1043 = vmatpush1.msra.mxu0 0.0
        %1044 = vmatprep.subr.mxu0 0.0
        %1045 = vmatpush1.msra.mxu0 0.0
        %1046 = vmatprep.subr.mxu0 0.0
        %1047 = vmatpush1.msra.mxu0 0.0
        %1048 = vmatprep.subr.mxu0 0.0
        %1049 = vmatpush1.msra.mxu0 0.0
        %1050 = vmatprep.subr.mxu0 0.0
        %1051 = vmatpush1.msra.mxu0 0.0
        %1052 = vmatprep.subr.mxu0 0.0
        %1053 = vmatpush1.msra.mxu0 0.0
        %1054 = vmatprep.mubr.f32.mxu0 0.0
        %v1055 = vand.u32 %v246, 4294901760
        %1056 = vmatmul.mubr.f32.gmra.mrb[0].mxu0 %v1055
        %v1057 = vpop.f32.mrb[0].mxu0
        %v1058 = vadd.f32 %v943, %v1057
        %v1059 = vpop.f32.mrb[0].mxu0
        %v1060 = vadd.f32 %v945, %v1059
        %1061 = vmatprep.mubr.f32.mxu0 0.0
        %v1062 = vand.u32 %v249, 4294901760
        %1063 = vmatmul.mubr.f32.gmra.mrb[0].mxu0 %v1062
        %v1064 = vpop.f32.mrb[0].mxu0
        %v1065 = vadd.f32 %v954, %v1064
        %v1066 = vpop.f32.mrb[0].mxu0
        %v1067 = vadd.f32 %v956, %v1066
        %1068 = vmatprep.mubr.f32.mxu0 0.0
        %v1069 = vand.u32 %v252, 4294901760
        %1070 = vmatmul.mubr.f32.gmra.mrb[0].mxu0 %v1069
        %v1071 = vpop.f32.mrb[0].mxu0
        %v1072 = vadd.f32 %v965, %v1071
        %v1073 = vpop.f32.mrb[0].mxu0
        %v1074 = vadd.f32 %v967, %v1073
        %1075 = vmatprep.mubr.f32.mxu0 0.0
        %v1076 = vand.u32 %v255, 4294901760
        %1077 = vmatmul.mubr.f32.gmra.mrb[0].mxu0 %v1076
        %v1078 = vpop.f32.mrb[0].mxu0
        %v1079 = vadd.f32 %v976, %v1078
        %v1080 = vpop.f32.mrb[0].mxu0
        %v1081 = vadd.f32 %v978, %v1080
        %1082 = vdwg.mxu0
        %v1083 = vand.u32 %v243, 4294901760
        %v1084 = vsub.f32 %v243, %v1083
        %1085 = vmatprep.subr.mxu0 %v1084
        %v1086 = vand.u32 %v242, 4294901760
        %v1087 = vsub.f32 %v242, %v1086
        %1088 = vmatpush1.msra.mxu0 %v1087
        %1089 = vmatprep.subr.mxu0 0.0
        %1090 = vmatpush1.msra.mxu0 0.0
        %1091 = vmatprep.subr.mxu0 0.0
        %1092 = vmatpush1.msra.mxu0 0.0
        %1093 = vmatprep.subr.mxu0 0.0
        %1094 = vmatpush1.msra.mxu0 0.0
        %1095 = vmatprep.subr.mxu0 0.0
        %1096 = vmatpush1.msra.mxu0 0.0
        %1097 = vmatprep.subr.mxu0 0.0
        %1098 = vmatpush1.msra.mxu0 0.0
        %1099 = vmatprep.subr.mxu0 0.0
        %1100 = vmatpush1.msra.mxu0 0.0
        %1101 = vmatprep.subr.mxu0 0.0
        %1102 = vmatpush1.msra.mxu0 0.0
        %1103 = vmatprep.subr.mxu0 0.0
        %1104 = vmatpush1.msra.mxu0 0.0
        %1105 = vmatprep.subr.mxu0 0.0
        %1106 = vmatpush1.msra.mxu0 0.0
        %1107 = vmatprep.subr.mxu0 0.0
        %1108 = vmatpush1.msra.mxu0 0.0
        %1109 = vmatprep.subr.mxu0 0.0
        %1110 = vmatpush1.msra.mxu0 0.0
        %1111 = vmatprep.subr.mxu0 0.0
        %1112 = vmatpush1.msra.mxu0 0.0
        %1113 = vmatprep.subr.mxu0 0.0
        %1114 = vmatpush1.msra.mxu0 0.0
        %1115 = vmatprep.subr.mxu0 0.0
        %1116 = vmatpush1.msra.mxu0 0.0
        %1117 = vmatprep.subr.mxu0 0.0
        %1118 = vmatpush1.msra.mxu0 0.0
        %1119 = vmatprep.subr.mxu0 0.0
        %1120 = vmatpush1.msra.mxu0 0.0
        %1121 = vmatprep.subr.mxu0 0.0
        %1122 = vmatpush1.msra.mxu0 0.0
        %1123 = vmatprep.subr.mxu0 0.0
        %1124 = vmatpush1.msra.mxu0 0.0
        %1125 = vmatprep.subr.mxu0 0.0
        %1126 = vmatpush1.msra.mxu0 0.0
        %1127 = vmatprep.subr.mxu0 0.0
        %1128 = vmatpush1.msra.mxu0 0.0
        %1129 = vmatprep.subr.mxu0 0.0
        %1130 = vmatpush1.msra.mxu0 0.0
        %1131 = vmatprep.subr.mxu0 0.0
        %1132 = vmatpush1.msra.mxu0 0.0
        %1133 = vmatprep.subr.mxu0 0.0
        %1134 = vmatpush1.msra.mxu0 0.0
        %1135 = vmatprep.subr.mxu0 0.0
        %1136 = vmatpush1.msra.mxu0 0.0
        %1137 = vmatprep.subr.mxu0 0.0
        %1138 = vmatpush1.msra.mxu0 0.0
        %1139 = vmatprep.subr.mxu0 0.0
        %1140 = vmatpush1.msra.mxu0 0.0
        %1141 = vmatprep.subr.mxu0 0.0
        %1142 = vmatpush1.msra.mxu0 0.0
        %1143 = vmatprep.subr.mxu0 0.0
        %1144 = vmatpush1.msra.mxu0 0.0
        %1145 = vmatprep.subr.mxu0 0.0
        %1146 = vmatpush1.msra.mxu0 0.0
        %1147 = vmatprep.subr.mxu0 0.0
        %1148 = vmatpush1.msra.mxu0 0.0
        %1149 = vmatprep.subr.mxu0 0.0
        %1150 = vmatpush1.msra.mxu0 0.0
        %1151 = vmatprep.mubr.f32.mxu0 0.0
        %v1152 = vand.u32 %v246, 4294901760
        %v1153 = vsub.f32 %v246, %v1152
        %1154 = vmatmul.mubr.f32.gmra.mrb[0].mxu0 %v1153
        %v1155 = vpop.f32.mrb[0].mxu0
        %v1156 = vadd.f32 %v1058, %v1155
        %v1157 = vpop.f32.mrb[0].mxu0
        %v1158 = vadd.f32 %v1060, %v1157
        %1159 = vmatprep.mubr.f32.mxu0 0.0
        %v1160 = vand.u32 %v249, 4294901760
        %v1161 = vsub.f32 %v249, %v1160
        %1162 = vmatmul.mubr.f32.gmra.mrb[0].mxu0 %v1161
        %v1163 = vpop.f32.mrb[0].mxu0
        %v1164 = vadd.f32 %v1065, %v1163
        %v1165 = vpop.f32.mrb[0].mxu0
        %v1166 = vadd.f32 %v1067, %v1165
        %1167 = vmatprep.mubr.f32.mxu0 0.0
        %v1168 = vand.u32 %v252, 4294901760
        %v1169 = vsub.f32 %v252, %v1168
        %1170 = vmatmul.mubr.f32.gmra.mrb[0].mxu0 %v1169
        %v1171 = vpop.f32.mrb[0].mxu0
        %v1172 = vadd.f32 %v1072, %v1171
        %v1173 = vpop.f32.mrb[0].mxu0
        %v1174 = vadd.f32 %v1074, %v1173
        %1175 = vmatprep.mubr.f32.mxu0 0.0
        %v1176 = vand.u32 %v255, 4294901760
        %v1177 = vsub.f32 %v255, %v1176
        %1178 = vmatmul.mubr.f32.gmra.mrb[0].mxu0 %v1177
        %v1179 = vpop.f32.mrb[0].mxu0
        %v1180 = vadd.f32 %v1079, %v1179
        %v1181 = vpop.f32.mrb[0].mxu0
        %v1182 = vadd.f32 %v1081, %v1181
        %1183 = vdwg.mxu0
        %v1184 = vand.u32 %v243, 4294901760
        %1185 = vmatprep.subr.mxu0 %v1184
        %v1186 = vand.u32 %v242, 4294901760
        %1187 = vmatpush1.msra.mxu0 %v1186
        %1188 = vmatprep.subr.mxu0 0.0
        %1189 = vmatpush1.msra.mxu0 0.0
        %1190 = vmatprep.subr.mxu0 0.0
        %1191 = vmatpush1.msra.mxu0 0.0
        %1192 = vmatprep.subr.mxu0 0.0
        %1193 = vmatpush1.msra.mxu0 0.0
        %1194 = vmatprep.subr.mxu0 0.0
        %1195 = vmatpush1.msra.mxu0 0.0
        %1196 = vmatprep.subr.mxu0 0.0
        %1197 = vmatpush1.msra.mxu0 0.0
        %1198 = vmatprep.subr.mxu0 0.0
        %1199 = vmatpush1.msra.mxu0 0.0
        %1200 = vmatprep.subr.mxu0 0.0
        %1201 = vmatpush1.msra.mxu0 0.0
        %1202 = vmatprep.subr.mxu0 0.0
        %1203 = vmatpush1.msra.mxu0 0.0
        %1204 = vmatprep.subr.mxu0 0.0
        %1205 = vmatpush1.msra.mxu0 0.0
        %1206 = vmatprep.subr.mxu0 0.0
        %1207 = vmatpush1.msra.mxu0 0.0
        %1208 = vmatprep.subr.mxu0 0.0
        %1209 = vmatpush1.msra.mxu0 0.0
        %1210 = vmatprep.subr.mxu0 0.0
        %1211 = vmatpush1.msra.mxu0 0.0
        %1212 = vmatprep.subr.mxu0 0.0
        %1213 = vmatpush1.msra.mxu0 0.0
        %1214 = vmatprep.subr.mxu0 0.0
        %1215 = vmatpush1.msra.mxu0 0.0
        %1216 = vmatprep.subr.mxu0 0.0
        %1217 = vmatpush1.msra.mxu0 0.0
        %1218 = vmatprep.subr.mxu0 0.0
        %1219 = vmatpush1.msra.mxu0 0.0
        %1220 = vmatprep.subr.mxu0 0.0
        %1221 = vmatpush1.msra.mxu0 0.0
        %1222 = vmatprep.subr.mxu0 0.0
        %1223 = vmatpush1.msra.mxu0 0.0
        %1224 = vmatprep.subr.mxu0 0.0
        %1225 = vmatpush1.msra.mxu0 0.0
        %1226 = vmatprep.subr.mxu0 0.0
        %1227 = vmatpush1.msra.mxu0 0.0
        %1228 = vmatprep.subr.mxu0 0.0
        %1229 = vmatpush1.msra.mxu0 0.0
        %1230 = vmatprep.subr.mxu0 0.0
        %1231 = vmatpush1.msra.mxu0 0.0
        %1232 = vmatprep.subr.mxu0 0.0
        %1233 = vmatpush1.msra.mxu0 0.0
        %1234 = vmatprep.subr.mxu0 0.0
        %1235 = vmatpush1.msra.mxu0 0.0
        %1236 = vmatprep.subr.mxu0 0.0
        %1237 = vmatpush1.msra.mxu0 0.0
        %1238 = vmatprep.subr.mxu0 0.0
        %1239 = vmatpush1.msra.mxu0 0.0
        %1240 = vmatprep.subr.mxu0 0.0
        %1241 = vmatpush1.msra.mxu0 0.0
        %1242 = vmatprep.subr.mxu0 0.0
        %1243 = vmatpush1.msra.mxu0 0.0
        %1244 = vmatprep.subr.mxu0 0.0
        %1245 = vmatpush1.msra.mxu0 0.0
        %1246 = vmatprep.subr.mxu0 0.0
        %1247 = vmatpush1.msra.mxu0 0.0
        %1248 = vmatprep.subr.mxu0 0.0
        %1249 = vmatpush1.msra.mxu0 0.0
        %1250 = vmatprep.mubr.f32.mxu0 0.0
        %v1251 = vand.u32 %v246, 4294901760
        %v1252 = vsub.f32 %v246, %v1251
        %v1253 = vand.u32 %v1252, 4294901760
        %1254 = vmatmul.mubr.f32.gmra.mrb[0].mxu0 %v1253
        %v1255 = vpop.f32.mrb[0].mxu0
        %v1256 = vadd.f32 %v1156, %v1255
        %v1257 = vpop.f32.mrb[0].mxu0
        %v1258 = vadd.f32 %v1158, %v1257
        %1259 = vmatprep.mubr.f32.mxu0 0.0
        %v1260 = vand.u32 %v249, 4294901760
        %v1261 = vsub.f32 %v249, %v1260
        %v1262 = vand.u32 %v1261, 4294901760
        %1263 = vmatmul.mubr.f32.gmra.mrb[0].mxu0 %v1262
        %v1264 = vpop.f32.mrb[0].mxu0
        %v1265 = vadd.f32 %v1164, %v1264
        %v1266 = vpop.f32.mrb[0].mxu0
        %v1267 = vadd.f32 %v1166, %v1266
        %1268 = vmatprep.mubr.f32.mxu0 0.0
        %v1269 = vand.u32 %v252, 4294901760
        %v1270 = vsub.f32 %v252, %v1269
        %v1271 = vand.u32 %v1270, 4294901760
        %1272 = vmatmul.mubr.f32.gmra.mrb[0].mxu0 %v1271
        %v1273 = vpop.f32.mrb[0].mxu0
        %v1274 = vadd.f32 %v1172, %v1273
        %v1275 = vpop.f32.mrb[0].mxu0
        %v1276 = vadd.f32 %v1174, %v1275
        %1277 = vmatprep.mubr.f32.mxu0 0.0
        %v1278 = vand.u32 %v255, 4294901760
        %v1279 = vsub.f32 %v255, %v1278
        %v1280 = vand.u32 %v1279, 4294901760
        %1281 = vmatmul.mubr.f32.gmra.mrb[0].mxu0 %v1280
        %v1282 = vpop.f32.mrb[0].mxu0
        %v1283 = vadd.f32 %v1180, %v1282
        %v1284 = vpop.f32.mrb[0].mxu0
        %v1285 = vadd.f32 %v1182, %v1284
        %1286 = vdwg.mxu0
        %v1287 = vand.u32 %v243, 4294901760
        %v1288 = vsub.f32 %v243, %v1287
        %v1289 = vand.u32 %v1288, 4294901760
        %1290 = vmatprep.subr.mxu0 %v1289
        %v1291 = vand.u32 %v242, 4294901760
        %v1292 = vsub.f32 %v242, %v1291
        %v1293 = vand.u32 %v1292, 4294901760
        %1294 = vmatpush1.msra.mxu0 %v1293
        %1295 = vmatprep.subr.mxu0 0.0
        %1296 = vmatpush1.msra.mxu0 0.0
        %1297 = vmatprep.subr.mxu0 0.0
        %1298 = vmatpush1.msra.mxu0 0.0
        %1299 = vmatprep.subr.mxu0 0.0
        %1300 = vmatpush1.msra.mxu0 0.0
        %1301 = vmatprep.subr.mxu0 0.0
        %1302 = vmatpush1.msra.mxu0 0.0
        %1303 = vmatprep.subr.mxu0 0.0
        %1304 = vmatpush1.msra.mxu0 0.0
        %1305 = vmatprep.subr.mxu0 0.0
        %1306 = vmatpush1.msra.mxu0 0.0
        %1307 = vmatprep.subr.mxu0 0.0
        %1308 = vmatpush1.msra.mxu0 0.0
        %1309 = vmatprep.subr.mxu0 0.0
        %1310 = vmatpush1.msra.mxu0 0.0
        %1311 = vmatprep.subr.mxu0 0.0
        %1312 = vmatpush1.msra.mxu0 0.0
        %1313 = vmatprep.subr.mxu0 0.0
        %1314 = vmatpush1.msra.mxu0 0.0
        %1315 = vmatprep.subr.mxu0 0.0
        %1316 = vmatpush1.msra.mxu0 0.0
        %1317 = vmatprep.subr.mxu0 0.0
        %1318 = vmatpush1.msra.mxu0 0.0
        %1319 = vmatprep.subr.mxu0 0.0
        %1320 = vmatpush1.msra.mxu0 0.0
        %1321 = vmatprep.subr.mxu0 0.0
        %1322 = vmatpush1.msra.mxu0 0.0
        %1323 = vmatprep.subr.mxu0 0.0
        %1324 = vmatpush1.msra.mxu0 0.0
        %1325 = vmatprep.subr.mxu0 0.0
        %1326 = vmatpush1.msra.mxu0 0.0
        %1327 = vmatprep.subr.mxu0 0.0
        %1328 = vmatpush1.msra.mxu0 0.0
        %1329 = vmatprep.subr.mxu0 0.0
        %1330 = vmatpush1.msra.mxu0 0.0
        %1331 = vmatprep.subr.mxu0 0.0
        %1332 = vmatpush1.msra.mxu0 0.0
        %1333 = vmatprep.subr.mxu0 0.0
        %1334 = vmatpush1.msra.mxu0 0.0
        %1335 = vmatprep.subr.mxu0 0.0
        %1336 = vmatpush1.msra.mxu0 0.0
        %1337 = vmatprep.subr.mxu0 0.0
        %1338 = vmatpush1.msra.mxu0 0.0
        %1339 = vmatprep.subr.mxu0 0.0
        %1340 = vmatpush1.msra.mxu0 0.0
        %1341 = vmatprep.subr.mxu0 0.0
        %1342 = vmatpush1.msra.mxu0 0.0
        %1343 = vmatprep.subr.mxu0 0.0
        %1344 = vmatpush1.msra.mxu0 0.0
        %1345 = vmatprep.subr.mxu0 0.0
        %1346 = vmatpush1.msra.mxu0 0.0
        %1347 = vmatprep.subr.mxu0 0.0
        %1348 = vmatpush1.msra.mxu0 0.0
        %1349 = vmatprep.subr.mxu0 0.0
        %1350 = vmatpush1.msra.mxu0 0.0
        %1351 = vmatprep.subr.mxu0 0.0
        %1352 = vmatpush1.msra.mxu0 0.0
        %1353 = vmatprep.subr.mxu0 0.0
        %1354 = vmatpush1.msra.mxu0 0.0
        %1355 = vmatprep.subr.mxu0 0.0
        %1356 = vmatpush1.msra.mxu0 0.0
        %1357 = vmatprep.mubr.f32.mxu0 0.0
        %v1358 = vand.u32 %v246, 4294901760
        %1359 = vmatmul.mubr.f32.gmra.mrb[0].mxu0 %v1358
        %v1360 = vpop.f32.mrb[0].mxu0
        %v1361 = vadd.f32 %v1256, %v1360
        %v1362 = vpop.f32.mrb[0].mxu0
        %v1363 = vadd.f32 %v1258, %v1362
        %1364 = vmatprep.mubr.f32.mxu0 0.0
        %v1365 = vand.u32 %v249, 4294901760
        %1366 = vmatmul.mubr.f32.gmra.mrb[0].mxu0 %v1365
        %v1367 = vpop.f32.mrb[0].mxu0
        %v1368 = vadd.f32 %v1265, %v1367
        %v1369 = vpop.f32.mrb[0].mxu0
        %v1370 = vadd.f32 %v1267, %v1369
        %1371 = vmatprep.mubr.f32.mxu0 0.0
        %v1372 = vand.u32 %v252, 4294901760
        %1373 = vmatmul.mubr.f32.gmra.mrb[0].mxu0 %v1372
        %v1374 = vpop.f32.mrb[0].mxu0
        %v1375 = vadd.f32 %v1274, %v1374
        %v1376 = vpop.f32.mrb[0].mxu0
        %v1377 = vadd.f32 %v1276, %v1376
        %1378 = vmatprep.mubr.f32.mxu0 0.0
        %v1379 = vand.u32 %v255, 4294901760
        %1380 = vmatmul.mubr.f32.gmra.mrb[0].mxu0 %v1379
        %v1381 = vpop.f32.mrb[0].mxu0
        %v1382 = vadd.f32 %v1283, %v1381
        %v1383 = vpop.f32.mrb[0].mxu0
        %v1384 = vadd.f32 %v1285, %v1383
        %1385 = vdwg.mxu0
        %v1386 = vand.u32 %v243, 4294901760
        %1387 = vmatprep.subr.mxu0 %v1386
        %v1388 = vand.u32 %v242, 4294901760
        %1389 = vmatpush1.msra.mxu0 %v1388
        %1390 = vmatprep.subr.mxu0 0.0
        %1391 = vmatpush1.msra.mxu0 0.0
        %1392 = vmatprep.subr.mxu0 0.0
        %1393 = vmatpush1.msra.mxu0 0.0
        %1394 = vmatprep.subr.mxu0 0.0
        %1395 = vmatpush1.msra.mxu0 0.0
        %1396 = vmatprep.subr.mxu0 0.0
        %1397 = vmatpush1.msra.mxu0 0.0
        %1398 = vmatprep.subr.mxu0 0.0
        %1399 = vmatpush1.msra.mxu0 0.0
        %1400 = vmatprep.subr.mxu0 0.0
        %1401 = vmatpush1.msra.mxu0 0.0
        %1402 = vmatprep.subr.mxu0 0.0
        %1403 = vmatpush1.msra.mxu0 0.0
        %1404 = vmatprep.subr.mxu0 0.0
        %1405 = vmatpush1.msra.mxu0 0.0
        %1406 = vmatprep.subr.mxu0 0.0
        %1407 = vmatpush1.msra.mxu0 0.0
        %1408 = vmatprep.subr.mxu0 0.0
        %1409 = vmatpush1.msra.mxu0 0.0
        %1410 = vmatprep.subr.mxu0 0.0
        %1411 = vmatpush1.msra.mxu0 0.0
        %1412 = vmatprep.subr.mxu0 0.0
        %1413 = vmatpush1.msra.mxu0 0.0
        %1414 = vmatprep.subr.mxu0 0.0
        %1415 = vmatpush1.msra.mxu0 0.0
        %1416 = vmatprep.subr.mxu0 0.0
        %1417 = vmatpush1.msra.mxu0 0.0
        %1418 = vmatprep.subr.mxu0 0.0
        %1419 = vmatpush1.msra.mxu0 0.0
        %1420 = vmatprep.subr.mxu0 0.0
        %1421 = vmatpush1.msra.mxu0 0.0
        %1422 = vmatprep.subr.mxu0 0.0
        %1423 = vmatpush1.msra.mxu0 0.0
        %1424 = vmatprep.subr.mxu0 0.0
        %1425 = vmatpush1.msra.mxu0 0.0
        %1426 = vmatprep.subr.mxu0 0.0
        %1427 = vmatpush1.msra.mxu0 0.0
        %1428 = vmatprep.subr.mxu0 0.0
        %1429 = vmatpush1.msra.mxu0 0.0
        %1430 = vmatprep.subr.mxu0 0.0
        %1431 = vmatpush1.msra.mxu0 0.0
        %1432 = vmatprep.subr.mxu0 0.0
        %1433 = vmatpush1.msra.mxu0 0.0
        %1434 = vmatprep.subr.mxu0 0.0
        %1435 = vmatpush1.msra.mxu0 0.0
        %1436 = vmatprep.subr.mxu0 0.0
        %1437 = vmatpush1.msra.mxu0 0.0
        %1438 = vmatprep.subr.mxu0 0.0
        %1439 = vmatpush1.msra.mxu0 0.0
        %1440 = vmatprep.subr.mxu0 0.0
        %1441 = vmatpush1.msra.mxu0 0.0
        %1442 = vmatprep.subr.mxu0 0.0
        %1443 = vmatpush1.msra.mxu0 0.0
        %1444 = vmatprep.subr.mxu0 0.0
        %1445 = vmatpush1.msra.mxu0 0.0
        %1446 = vmatprep.subr.mxu0 0.0
        %1447 = vmatpush1.msra.mxu0 0.0
        %1448 = vmatprep.subr.mxu0 0.0
        %1449 = vmatpush1.msra.mxu0 0.0
        %1450 = vmatprep.subr.mxu0 0.0
        %1451 = vmatpush1.msra.mxu0 0.0
        %1452 = vmatprep.mubr.f32.mxu0 0.0
        %v1453 = vand.u32 %v246, 4294901760
        %1454 = vmatmul.mubr.f32.gmra.mrb[0].mxu0 %v1453
        %v1455 = vpop.f32.mrb[0].mxu0
        %v1456 = vadd.f32 %v1361, %v1455
        %v1457 = vpop.f32.mrb[0].mxu0
        %v1458 = vadd.f32 %v1363, %v1457
        %1459 = vmatprep.mubr.f32.mxu0 0.0
        %v1460 = vand.u32 %v249, 4294901760
        %1461 = vmatmul.mubr.f32.gmra.mrb[0].mxu0 %v1460
        %v1462 = vpop.f32.mrb[0].mxu0
        %v1463 = vadd.f32 %v1368, %v1462
        %v1464 = vpop.f32.mrb[0].mxu0
        %v1465 = vadd.f32 %v1370, %v1464
        %1466 = vmatprep.mubr.f32.mxu0 0.0
        %v1467 = vand.u32 %v252, 4294901760
        %1468 = vmatmul.mubr.f32.gmra.mrb[0].mxu0 %v1467
        %v1469 = vpop.f32.mrb[0].mxu0
        %v1470 = vadd.f32 %v1375, %v1469
        %v1471 = vpop.f32.mrb[0].mxu0
        %v1472 = vadd.f32 %v1377, %v1471
        %1473 = vmatprep.mubr.f32.mxu0 0.0
        %v1474 = vand.u32 %v255, 4294901760
        %1475 = vmatmul.mubr.f32.gmra.mrb[0].mxu0 %v1474
        %v1476 = vpop.f32.mrb[0].mxu0
        %v1477 = vadd.f32 %v1382, %v1476
        %v1478 = vpop.f32.mrb[0].mxu0
        %v1479 = vadd.f32 %v1384, %v1478
        %1480 = vdwg.mxu0
        %v1481 = vmax.f32 %v844, 0.0
        %v1482 = vmax.f32 %v846, 0.0
        %v1483 = vmax.f32 %v1456, 0.0
        %v1484 = vmax.f32 %v1458, 0.0
        %v1485 = vmax.f32 %v851, 0.0
        %v1486 = vmax.f32 %v853, 0.0
        %v1487 = vmax.f32 %v1463, 0.0
        %v1488 = vmax.f32 %v1465, 0.0
        %v1489 = vmax.f32 %v858, 0.0
        %v1490 = vmax.f32 %v860, 0.0
        %v1491 = vmax.f32 %v1470, 0.0
        %v1492 = vmax.f32 %v1472, 0.0
        %v1493 = vmax.f32 %v865, 0.0
        %v1494 = vmax.f32 %v867, 0.0
        %v1495 = vmax.f32 %v1477, 0.0
        %v1496 = vmax.f32 %v1479, 0.0
        %1497 = vst [vmem:[%s207] sm:$0xff] %v1481
        %1498 = vst [vmem:[%s207 + $0x8] sm:$0xff] %v1482
        %1499 = vst [vmem:[%s207 + $0x10] sm:$0xff] %v1483
        %1500 = vst [vmem:[%s207 + $0x18] sm:$0xff] %v1484
        %1501 = vst [vmem:[%s207 + $0x20] sm:$0xff] %v1485
        %1502 = vst [vmem:[%s207 + $0x28] sm:$0xff] %v1486
        %1503 = vst [vmem:[%s207 + $0x30] sm:$0xff] %v1487
        %1504 = vst [vmem:[%s207 + $0x38] sm:$0xff] %v1488
        %1505 = vst [vmem:[%s207 + $0x40] sm:$0xff] %v1489
        %1506 = vst [vmem:[%s207 + $0x48] sm:$0xff] %v1490
        %1507 = vst [vmem:[%s207 + $0x50] sm:$0xff] %v1491
        %1508 = vst [vmem:[%s207 + $0x58] sm:$0xff] %v1492
        %1509 = vst [vmem:[%s207 + $0x60] sm:$0xff] %v1493
        %1510 = vst [vmem:[%s207 + $0x68] sm:$0xff] %v1494
        %1511 = vst [vmem:[%s207 + $0x70] sm:$0xff] %v1495
        %1512 = vst [vmem:[%s207 + $0x78] sm:$0xff] %v1496
        %s1513 = scalar_lea.vmem %s185, 32 [#allocation2]
        %v1514 = vld [vmem:[%s1513] sm:$0xff]
        %v1515 = vld [vmem:[%s1513 + $0x8] sm:$0xff]
        %v1516 = vld [vmem:[%s1513 + $0x10] sm:$0xff]
        %v1517 = vld [vmem:[%s1513 + $0x18] sm:$0xff]
        %v1518 = vand.u32 %v1515, 4294901760
        %1519 = vmatprep.subr.mxu0 %v1518
        %v1520 = vand.u32 %v1514, 4294901760
        %1521 = vmatpush1.msra.mxu0 %v1520
        %1522 = vmatprep.subr.mxu0 0.0
        %1523 = vmatpush1.msra.mxu0 0.0
        %1524 = vmatprep.subr.mxu0 0.0
        %1525 = vmatpush1.msra.mxu0 0.0
        %1526 = vmatprep.subr.mxu0 0.0
        %1527 = vmatpush1.msra.mxu0 0.0
        %1528 = vmatprep.subr.mxu0 0.0
        %1529 = vmatpush1.msra.mxu0 0.0
        %1530 = vmatprep.subr.mxu0 0.0
        %1531 = vmatpush1.msra.mxu0 0.0
        %1532 = vmatprep.subr.mxu0 0.0
        %1533 = vmatpush1.msra.mxu0 0.0
        %1534 = vmatprep.subr.mxu0 0.0
        %1535 = vmatpush1.msra.mxu0 0.0
        %1536 = vmatprep.subr.mxu0 0.0
        %1537 = vmatpush1.msra.mxu0 0.0
        %1538 = vmatprep.subr.mxu0 0.0
        %1539 = vmatpush1.msra.mxu0 0.0
        %1540 = vmatprep.subr.mxu0 0.0
        %1541 = vmatpush1.msra.mxu0 0.0
        %1542 = vmatprep.subr.mxu0 0.0
        %1543 = vmatpush1.msra.mxu0 0.0
        %1544 = vmatprep.subr.mxu0 0.0
        %1545 = vmatpush1.msra.mxu0 0.0
        %1546 = vmatprep.subr.mxu0 0.0
        %1547 = vmatpush1.msra.mxu0 0.0
        %1548 = vmatprep.subr.mxu0 0.0
        %1549 = vmatpush1.msra.mxu0 0.0
        %1550 = vmatprep.subr.mxu0 0.0
        %1551 = vmatpush1.msra.mxu0 0.0
        %1552 = vmatprep.subr.mxu0 0.0
        %1553 = vmatpush1.msra.mxu0 0.0
        %1554 = vmatprep.subr.mxu0 0.0
        %1555 = vmatpush1.msra.mxu0 0.0
        %1556 = vmatprep.subr.mxu0 0.0
        %1557 = vmatpush1.msra.mxu0 0.0
        %1558 = vmatprep.subr.mxu0 0.0
        %1559 = vmatpush1.msra.mxu0 0.0
        %1560 = vmatprep.subr.mxu0 0.0
        %1561 = vmatpush1.msra.mxu0 0.0
        %1562 = vmatprep.subr.mxu0 0.0
        %1563 = vmatpush1.msra.mxu0 0.0
        %1564 = vmatprep.subr.mxu0 0.0
        %1565 = vmatpush1.msra.mxu0 0.0
        %1566 = vmatprep.subr.mxu0 0.0
        %1567 = vmatpush1.msra.mxu0 0.0
        %1568 = vmatprep.subr.mxu0 0.0
        %1569 = vmatpush1.msra.mxu0 0.0
        %1570 = vmatprep.subr.mxu0 0.0
        %1571 = vmatpush1.msra.mxu0 0.0
        %1572 = vmatprep.subr.mxu0 0.0
        %1573 = vmatpush1.msra.mxu0 0.0
        %1574 = vmatprep.subr.mxu0 0.0
        %1575 = vmatpush1.msra.mxu0 0.0
        %1576 = vmatprep.subr.mxu0 0.0
        %1577 = vmatpush1.msra.mxu0 0.0
        %1578 = vmatprep.subr.mxu0 0.0
        %1579 = vmatpush1.msra.mxu0 0.0
        %1580 = vmatprep.subr.mxu0 0.0
        %1581 = vmatpush1.msra.mxu0 0.0
        %1582 = vmatprep.subr.mxu0 0.0
        %1583 = vmatpush1.msra.mxu0 0.0
        %1584 = vmatprep.mubr.f32.mxu0 0.0
        %v1585 = vand.u32 %v246, 4294901760
        %v1586 = vsub.f32 %v246, %v1585
        %v1587 = vand.u32 %v1586, 4294901760
        %v1588 = vsub.f32 %v1586, %v1587
        %v1589 = vand.u32 %v1588, 4294901760
        %1590 = vmatmul.mubr.f32.gmra.mrb[0].mxu0 %v1589
        %v1591 = vpop.f32.mrb[0].mxu0
        %v1592 = vadd.f32 %v223, %v1591
        %v1593 = vpop.f32.mrb[0].mxu0
        %v1594 = vadd.f32 %v223, %v1593
        %1595 = vmatprep.mubr.f32.mxu0 0.0
        %v1596 = vand.u32 %v249, 4294901760
        %v1597 = vsub.f32 %v249, %v1596
        %v1598 = vand.u32 %v1597, 4294901760
        %v1599 = vsub.f32 %v1597, %v1598
        %v1600 = vand.u32 %v1599, 4294901760
        %1601 = vmatmul.mubr.f32.gmra.mrb[0].mxu0 %v1600
        %v1602 = vpop.f32.mrb[0].mxu0
        %v1603 = vadd.f32 %v228, %v1602
        %v1604 = vpop.f32.mrb[0].mxu0
        %v1605 = vadd.f32 %v228, %v1604
        %1606 = vmatprep.mubr.f32.mxu0 0.0
        %v1607 = vand.u32 %v252, 4294901760
        %v1608 = vsub.f32 %v252, %v1607
        %v1609 = vand.u32 %v1608, 4294901760
        %v1610 = vsub.f32 %v1608, %v1609
        %v1611 = vand.u32 %v1610, 4294901760
        %1612 = vmatmul.mubr.f32.gmra.mrb[0].mxu0 %v1611
        %v1613 = vpop.f32.mrb[0].mxu0
        %v1614 = vadd.f32 %v233, %v1613
        %v1615 = vpop.f32.mrb[0].mxu0
        %v1616 = vadd.f32 %v233, %v1615
        %1617 = vmatprep.mubr.f32.mxu0 0.0
        %v1618 = vand.u32 %v255, 4294901760
        %v1619 = vsub.f32 %v255, %v1618
        %v1620 = vand.u32 %v1619, 4294901760
        %v1621 = vsub.f32 %v1619, %v1620
        %v1622 = vand.u32 %v1621, 4294901760
        %1623 = vmatmul.mubr.f32.gmra.mrb[0].mxu0 %v1622
        %v1624 = vpop.f32.mrb[0].mxu0
        %v1625 = vadd.f32 %v238, %v1624
        %v1626 = vpop.f32.mrb[0].mxu0
        %v1627 = vadd.f32 %v238, %v1626
        %1628 = vdwg.mxu0
        %v1629 = vand.u32 %v1515, 4294901760
        %v1630 = vsub.f32 %v1515, %v1629
        %v1631 = vand.u32 %v1630, 4294901760
        %v1632 = vsub.f32 %v1630, %v1631
        %v1633 = vand.u32 %v1632, 4294901760
        %1634 = vmatprep.subr.mxu0 %v1633
        %v1635 = vand.u32 %v1514, 4294901760
        %v1636 = vsub.f32 %v1514, %v1635
        %v1637 = vand.u32 %v1636, 4294901760
        %v1638 = vsub.f32 %v1636, %v1637
        %v1639 = vand.u32 %v1638, 4294901760
        %1640 = vmatpush1.msra.mxu0 %v1639
        %1641 = vmatprep.subr.mxu0 0.0
        %1642 = vmatpush1.msra.mxu0 0.0
        %1643 = vmatprep.subr.mxu0 0.0
        %1644 = vmatpush1.msra.mxu0 0.0
        %1645 = vmatprep.subr.mxu0 0.0
        %1646 = vmatpush1.msra.mxu0 0.0
        %1647 = vmatprep.subr.mxu0 0.0
        %1648 = vmatpush1.msra.mxu0 0.0
        %1649 = vmatprep.subr.mxu0 0.0
        %1650 = vmatpush1.msra.mxu0 0.0
        %1651 = vmatprep.subr.mxu0 0.0
        %1652 = vmatpush1.msra.mxu0 0.0
        %1653 = vmatprep.subr.mxu0 0.0
        %1654 = vmatpush1.msra.mxu0 0.0
        %1655 = vmatprep.subr.mxu0 0.0
        %1656 = vmatpush1.msra.mxu0 0.0
        %1657 = vmatprep.subr.mxu0 0.0
        %1658 = vmatpush1.msra.mxu0 0.0
        %1659 = vmatprep.subr.mxu0 0.0
        %1660 = vmatpush1.msra.mxu0 0.0
        %1661 = vmatprep.subr.mxu0 0.0
        %1662 = vmatpush1.msra.mxu0 0.0
        %1663 = vmatprep.subr.mxu0 0.0
        %1664 = vmatpush1.msra.mxu0 0.0
        %1665 = vmatprep.subr.mxu0 0.0
        %1666 = vmatpush1.msra.mxu0 0.0
        %1667 = vmatprep.subr.mxu0 0.0
        %1668 = vmatpush1.msra.mxu0 0.0
        %1669 = vmatprep.subr.mxu0 0.0
        %1670 = vmatpush1.msra.mxu0 0.0
        %1671 = vmatprep.subr.mxu0 0.0
        %1672 = vmatpush1.msra.mxu0 0.0
        %1673 = vmatprep.subr.mxu0 0.0
        %1674 = vmatpush1.msra.mxu0 0.0
        %1675 = vmatprep.subr.mxu0 0.0
        %1676 = vmatpush1.msra.mxu0 0.0
        %1677 = vmatprep.subr.mxu0 0.0
        %1678 = vmatpush1.msra.mxu0 0.0
        %1679 = vmatprep.subr.mxu0 0.0
        %1680 = vmatpush1.msra.mxu0 0.0
        %1681 = vmatprep.subr.mxu0 0.0
        %1682 = vmatpush1.msra.mxu0 0.0
        %1683 = vmatprep.subr.mxu0 0.0
        %1684 = vmatpush1.msra.mxu0 0.0
        %1685 = vmatprep.subr.mxu0 0.0
        %1686 = vmatpush1.msra.mxu0 0.0
        %1687 = vmatprep.subr.mxu0 0.0
        %1688 = vmatpush1.msra.mxu0 0.0
        %1689 = vmatprep.subr.mxu0 0.0
        %1690 = vmatpush1.msra.mxu0 0.0
        %1691 = vmatprep.subr.mxu0 0.0
        %1692 = vmatpush1.msra.mxu0 0.0
        %1693 = vmatprep.subr.mxu0 0.0
        %1694 = vmatpush1.msra.mxu0 0.0
        %1695 = vmatprep.subr.mxu0 0.0
        %1696 = vmatpush1.msra.mxu0 0.0
        %1697 = vmatprep.subr.mxu0 0.0
        %1698 = vmatpush1.msra.mxu0 0.0
        %1699 = vmatprep.subr.mxu0 0.0
        %1700 = vmatpush1.msra.mxu0 0.0
        %1701 = vmatprep.subr.mxu0 0.0
        %1702 = vmatpush1.msra.mxu0 0.0
        %1703 = vmatprep.mubr.f32.mxu0 0.0
        %v1704 = vand.u32 %v246, 4294901760
        %1705 = vmatmul.mubr.f32.gmra.mrb[0].mxu0 %v1704
        %v1706 = vpop.f32.mrb[0].mxu0
        %v1707 = vadd.f32 %v1592, %v1706
        %v1708 = vpop.f32.mrb[0].mxu0
        %v1709 = vadd.f32 %v1594, %v1708
        %1710 = vmatprep.mubr.f32.mxu0 0.0
        %v1711 = vand.u32 %v249, 4294901760
        %1712 = vmatmul.mubr.f32.gmra.mrb[0].mxu0 %v1711
        %v1713 = vpop.f32.mrb[0].mxu0
        %v1714 = vadd.f32 %v1603, %v1713
        %v1715 = vpop.f32.mrb[0].mxu0
        %v1716 = vadd.f32 %v1605, %v1715
        %1717 = vmatprep.mubr.f32.mxu0 0.0
        %v1718 = vand.u32 %v252, 4294901760
        %1719 = vmatmul.mubr.f32.gmra.mrb[0].mxu0 %v1718
        %v1720 = vpop.f32.mrb[0].mxu0
        %v1721 = vadd.f32 %v1614, %v1720
        %v1722 = vpop.f32.mrb[0].mxu0
        %v1723 = vadd.f32 %v1616, %v1722
        %1724 = vmatprep.mubr.f32.mxu0 0.0
        %v1725 = vand.u32 %v255, 4294901760
        %1726 = vmatmul.mubr.f32.gmra.mrb[0].mxu0 %v1725
        %v1727 = vpop.f32.mrb[0].mxu0
        %v1728 = vadd.f32 %v1625, %v1727
        %v1729 = vpop.f32.mrb[0].mxu0
        %v1730 = vadd.f32 %v1627, %v1729
        %1731 = vdwg.mxu0
        %v1732 = vand.u32 %v1515, 4294901760
        %v1733 = vsub.f32 %v1515, %v1732
        %1734 = vmatprep.subr.mxu0 %v1733
        %v1735 = vand.u32 %v1514, 4294901760
        %v1736 = vsub.f32 %v1514, %v1735
        %1737 = vmatpush1.msra.mxu0 %v1736
        %1738 = vmatprep.subr.mxu0 0.0
        %1739 = vmatpush1.msra.mxu0 0.0
        %1740 = vmatprep.subr.mxu0 0.0
        %1741 = vmatpush1.msra.mxu0 0.0
        %1742 = vmatprep.subr.mxu0 0.0
        %1743 = vmatpush1.msra.mxu0 0.0
        %1744 = vmatprep.subr.mxu0 0.0
        %1745 = vmatpush1.msra.mxu0 0.0
        %1746 = vmatprep.subr.mxu0 0.0
        %1747 = vmatpush1.msra.mxu0 0.0
        %1748 = vmatprep.subr.mxu0 0.0
        %1749 = vmatpush1.msra.mxu0 0.0
        %1750 = vmatprep.subr.mxu0 0.0
        %1751 = vmatpush1.msra.mxu0 0.0
        %1752 = vmatprep.subr.mxu0 0.0
        %1753 = vmatpush1.msra.mxu0 0.0
        %1754 = vmatprep.subr.mxu0 0.0
        %1755 = vmatpush1.msra.mxu0 0.0
        %1756 = vmatprep.subr.mxu0 0.0
        %1757 = vmatpush1.msra.mxu0 0.0
        %1758 = vmatprep.subr.mxu0 0.0
        %1759 = vmatpush1.msra.mxu0 0.0
        %1760 = vmatprep.subr.mxu0 0.0
        %1761 = vmatpush1.msra.mxu0 0.0
        %1762 = vmatprep.subr.mxu0 0.0
        %1763 = vmatpush1.msra.mxu0 0.0
        %1764 = vmatprep.subr.mxu0 0.0
        %1765 = vmatpush1.msra.mxu0 0.0
        %1766 = vmatprep.subr.mxu0 0.0
        %1767 = vmatpush1.msra.mxu0 0.0
        %1768 = vmatprep.subr.mxu0 0.0
        %1769 = vmatpush1.msra.mxu0 0.0
        %1770 = vmatprep.subr.mxu0 0.0
        %1771 = vmatpush1.msra.mxu0 0.0
        %1772 = vmatprep.subr.mxu0 0.0
        %1773 = vmatpush1.msra.mxu0 0.0
        %1774 = vmatprep.subr.mxu0 0.0
        %1775 = vmatpush1.msra.mxu0 0.0
        %1776 = vmatprep.subr.mxu0 0.0
        %1777 = vmatpush1.msra.mxu0 0.0
        %1778 = vmatprep.subr.mxu0 0.0
        %1779 = vmatpush1.msra.mxu0 0.0
        %1780 = vmatprep.subr.mxu0 0.0
        %1781 = vmatpush1.msra.mxu0 0.0
        %1782 = vmatprep.subr.mxu0 0.0
        %1783 = vmatpush1.msra.mxu0 0.0
        %1784 = vmatprep.subr.mxu0 0.0
        %1785 = vmatpush1.msra.mxu0 0.0
        %1786 = vmatprep.subr.mxu0 0.0
        %1787 = vmatpush1.msra.mxu0 0.0
        %1788 = vmatprep.subr.mxu0 0.0
        %1789 = vmatpush1.msra.mxu0 0.0
        %1790 = vmatprep.subr.mxu0 0.0
        %1791 = vmatpush1.msra.mxu0 0.0
        %1792 = vmatprep.subr.mxu0 0.0
        %1793 = vmatpush1.msra.mxu0 0.0
        %1794 = vmatprep.subr.mxu0 0.0
        %1795 = vmatpush1.msra.mxu0 0.0
        %1796 = vmatprep.subr.mxu0 0.0
        %1797 = vmatpush1.msra.mxu0 0.0
        %1798 = vmatprep.subr.mxu0 0.0
        %1799 = vmatpush1.msra.mxu0 0.0
        %1800 = vmatprep.mubr.f32.mxu0 0.0
        %v1801 = vand.u32 %v246, 4294901760
        %v1802 = vsub.f32 %v246, %v1801
        %1803 = vmatmul.mubr.f32.gmra.mrb[0].mxu0 %v1802
        %v1804 = vpop.f32.mrb[0].mxu0
        %v1805 = vadd.f32 %v1707, %v1804
        %v1806 = vpop.f32.mrb[0].mxu0
        %v1807 = vadd.f32 %v1709, %v1806
        %1808 = vmatprep.mubr.f32.mxu0 0.0
        %v1809 = vand.u32 %v249, 4294901760
        %v1810 = vsub.f32 %v249, %v1809
        %1811 = vmatmul.mubr.f32.gmra.mrb[0].mxu0 %v1810
        %v1812 = vpop.f32.mrb[0].mxu0
        %v1813 = vadd.f32 %v1714, %v1812
        %v1814 = vpop.f32.mrb[0].mxu0
        %v1815 = vadd.f32 %v1716, %v1814
        %1816 = vmatprep.mubr.f32.mxu0 0.0
        %v1817 = vand.u32 %v252, 4294901760
        %v1818 = vsub.f32 %v252, %v1817
        %1819 = vmatmul.mubr.f32.gmra.mrb[0].mxu0 %v1818
        %v1820 = vpop.f32.mrb[0].mxu0
        %v1821 = vadd.f32 %v1721, %v1820
        %v1822 = vpop.f32.mrb[0].mxu0
        %v1823 = vadd.f32 %v1723, %v1822
        %1824 = vmatprep.mubr.f32.mxu0 0.0
        %v1825 = vand.u32 %v255, 4294901760
        %v1826 = vsub.f32 %v255, %v1825
        %1827 = vmatmul.mubr.f32.gmra.mrb[0].mxu0 %v1826
        %v1828 = vpop.f32.mrb[0].mxu0
        %v1829 = vadd.f32 %v1728, %v1828
        %v1830 = vpop.f32.mrb[0].mxu0
        %v1831 = vadd.f32 %v1730, %v1830
        %1832 = vdwg.mxu0
        %v1833 = vand.u32 %v1515, 4294901760
        %1834 = vmatprep.subr.mxu0 %v1833
        %v1835 = vand.u32 %v1514, 4294901760
        %1836 = vmatpush1.msra.mxu0 %v1835
        %1837 = vmatprep.subr.mxu0 0.0
        %1838 = vmatpush1.msra.mxu0 0.0
        %1839 = vmatprep.subr.mxu0 0.0
        %1840 = vmatpush1.msra.mxu0 0.0
        %1841 = vmatprep.subr.mxu0 0.0
        %1842 = vmatpush1.msra.mxu0 0.0
        %1843 = vmatprep.subr.mxu0 0.0
        %1844 = vmatpush1.msra.mxu0 0.0
        %1845 = vmatprep.subr.mxu0 0.0
        %1846 = vmatpush1.msra.mxu0 0.0
        %1847 = vmatprep.subr.mxu0 0.0
        %1848 = vmatpush1.msra.mxu0 0.0
        %1849 = vmatprep.subr.mxu0 0.0
        %1850 = vmatpush1.msra.mxu0 0.0
        %1851 = vmatprep.subr.mxu0 0.0
        %1852 = vmatpush1.msra.mxu0 0.0
        %1853 = vmatprep.subr.mxu0 0.0
        %1854 = vmatpush1.msra.mxu0 0.0
        %1855 = vmatprep.subr.mxu0 0.0
        %1856 = vmatpush1.msra.mxu0 0.0
        %1857 = vmatprep.subr.mxu0 0.0
        %1858 = vmatpush1.msra.mxu0 0.0
        %1859 = vmatprep.subr.mxu0 0.0
        %1860 = vmatpush1.msra.mxu0 0.0
        %1861 = vmatprep.subr.mxu0 0.0
        %1862 = vmatpush1.msra.mxu0 0.0
        %1863 = vmatprep.subr.mxu0 0.0
        %1864 = vmatpush1.msra.mxu0 0.0
        %1865 = vmatprep.subr.mxu0 0.0
        %1866 = vmatpush1.msra.mxu0 0.0
        %1867 = vmatprep.subr.mxu0 0.0
        %1868 = vmatpush1.msra.mxu0 0.0
        %1869 = vmatprep.subr.mxu0 0.0
        %1870 = vmatpush1.msra.mxu0 0.0
        %1871 = vmatprep.subr.mxu0 0.0
        %1872 = vmatpush1.msra.mxu0 0.0
        %1873 = vmatprep.subr.mxu0 0.0
        %1874 = vmatpush1.msra.mxu0 0.0
        %1875 = vmatprep.subr.mxu0 0.0
        %1876 = vmatpush1.msra.mxu0 0.0
        %1877 = vmatprep.subr.mxu0 0.0
        %1878 = vmatpush1.msra.mxu0 0.0
        %1879 = vmatprep.subr.mxu0 0.0
        %1880 = vmatpush1.msra.mxu0 0.0
        %1881 = vmatprep.subr.mxu0 0.0
        %1882 = vmatpush1.msra.mxu0 0.0
        %1883 = vmatprep.subr.mxu0 0.0
        %1884 = vmatpush1.msra.mxu0 0.0
        %1885 = vmatprep.subr.mxu0 0.0
        %1886 = vmatpush1.msra.mxu0 0.0
        %1887 = vmatprep.subr.mxu0 0.0
        %1888 = vmatpush1.msra.mxu0 0.0
        %1889 = vmatprep.subr.mxu0 0.0
        %1890 = vmatpush1.msra.mxu0 0.0
        %1891 = vmatprep.subr.mxu0 0.0
        %1892 = vmatpush1.msra.mxu0 0.0
        %1893 = vmatprep.subr.mxu0 0.0
        %1894 = vmatpush1.msra.mxu0 0.0
        %1895 = vmatprep.subr.mxu0 0.0
        %1896 = vmatpush1.msra.mxu0 0.0
        %1897 = vmatprep.subr.mxu0 0.0
        %1898 = vmatpush1.msra.mxu0 0.0
        %1899 = vmatprep.mubr.f32.mxu0 0.0
        %v1900 = vand.u32 %v246, 4294901760
        %v1901 = vsub.f32 %v246, %v1900
        %v1902 = vand.u32 %v1901, 4294901760
        %1903 = vmatmul.mubr.f32.gmra.mrb[0].mxu0 %v1902
        %v1904 = vpop.f32.mrb[0].mxu0
        %v1905 = vadd.f32 %v1805, %v1904
        %v1906 = vpop.f32.mrb[0].mxu0
        %v1907 = vadd.f32 %v1807, %v1906
        %1908 = vmatprep.mubr.f32.mxu0 0.0
        %v1909 = vand.u32 %v249, 4294901760
        %v1910 = vsub.f32 %v249, %v1909
        %v1911 = vand.u32 %v1910, 4294901760
        %1912 = vmatmul.mubr.f32.gmra.mrb[0].mxu0 %v1911
        %v1913 = vpop.f32.mrb[0].mxu0
        %v1914 = vadd.f32 %v1813, %v1913
        %v1915 = vpop.f32.mrb[0].mxu0
        %v1916 = vadd.f32 %v1815, %v1915
        %1917 = vmatprep.mubr.f32.mxu0 0.0
        %v1918 = vand.u32 %v252, 4294901760
        %v1919 = vsub.f32 %v252, %v1918
        %v1920 = vand.u32 %v1919, 4294901760
        %1921 = vmatmul.mubr.f32.gmra.mrb[0].mxu0 %v1920
        %v1922 = vpop.f32.mrb[0].mxu0
        %v1923 = vadd.f32 %v1821, %v1922
        %v1924 = vpop.f32.mrb[0].mxu0
        %v1925 = vadd.f32 %v1823, %v1924
        %1926 = vmatprep.mubr.f32.mxu0 0.0
        %v1927 = vand.u32 %v255, 4294901760
        %v1928 = vsub.f32 %v255, %v1927
        %v1929 = vand.u32 %v1928, 4294901760
        %1930 = vmatmul.mubr.f32.gmra.mrb[0].mxu0 %v1929
        %v1931 = vpop.f32.mrb[0].mxu0
        %v1932 = vadd.f32 %v1829, %v1931
        %v1933 = vpop.f32.mrb[0].mxu0
        %v1934 = vadd.f32 %v1831, %v1933
        %1935 = vdwg.mxu0
        %v1936 = vand.u32 %v1515, 4294901760
        %v1937 = vsub.f32 %v1515, %v1936
        %v1938 = vand.u32 %v1937, 4294901760
        %1939 = vmatprep.subr.mxu0 %v1938
        %v1940 = vand.u32 %v1514, 4294901760
        %v1941 = vsub.f32 %v1514, %v1940
        %v1942 = vand.u32 %v1941, 4294901760
        %1943 = vmatpush1.msra.mxu0 %v1942
        %1944 = vmatprep.subr.mxu0 0.0
        %1945 = vmatpush1.msra.mxu0 0.0
        %1946 = vmatprep.subr.mxu0 0.0
        %1947 = vmatpush1.msra.mxu0 0.0
        %1948 = vmatprep.subr.mxu0 0.0
        %1949 = vmatpush1.msra.mxu0 0.0
        %1950 = vmatprep.subr.mxu0 0.0
        %1951 = vmatpush1.msra.mxu0 0.0
        %1952 = vmatprep.subr.mxu0 0.0
        %1953 = vmatpush1.msra.mxu0 0.0
        %1954 = vmatprep.subr.mxu0 0.0
        %1955 = vmatpush1.msra.mxu0 0.0
        %1956 = vmatprep.subr.mxu0 0.0
        %1957 = vmatpush1.msra.mxu0 0.0
        %1958 = vmatprep.subr.mxu0 0.0
        %1959 = vmatpush1.msra.mxu0 0.0
        %1960 = vmatprep.subr.mxu0 0.0
        %1961 = vmatpush1.msra.mxu0 0.0
        %1962 = vmatprep.subr.mxu0 0.0
        %1963 = vmatpush1.msra.mxu0 0.0
        %1964 = vmatprep.subr.mxu0 0.0
        %1965 = vmatpush1.msra.mxu0 0.0
        %1966 = vmatprep.subr.mxu0 0.0
        %1967 = vmatpush1.msra.mxu0 0.0
        %1968 = vmatprep.subr.mxu0 0.0
        %1969 = vmatpush1.msra.mxu0 0.0
        %1970 = vmatprep.subr.mxu0 0.0
        %1971 = vmatpush1.msra.mxu0 0.0
        %1972 = vmatprep.subr.mxu0 0.0
        %1973 = vmatpush1.msra.mxu0 0.0
        %1974 = vmatprep.subr.mxu0 0.0
        %1975 = vmatpush1.msra.mxu0 0.0
        %1976 = vmatprep.subr.mxu0 0.0
        %1977 = vmatpush1.msra.mxu0 0.0
        %1978 = vmatprep.subr.mxu0 0.0
        %1979 = vmatpush1.msra.mxu0 0.0
        %1980 = vmatprep.subr.mxu0 0.0
        %1981 = vmatpush1.msra.mxu0 0.0
        %1982 = vmatprep.subr.mxu0 0.0
        %1983 = vmatpush1.msra.mxu0 0.0
        %1984 = vmatprep.subr.mxu0 0.0
        %1985 = vmatpush1.msra.mxu0 0.0
        %1986 = vmatprep.subr.mxu0 0.0
        %1987 = vmatpush1.msra.mxu0 0.0
        %1988 = vmatprep.subr.mxu0 0.0
        %1989 = vmatpush1.msra.mxu0 0.0
        %1990 = vmatprep.subr.mxu0 0.0
        %1991 = vmatpush1.msra.mxu0 0.0
        %1992 = vmatprep.subr.mxu0 0.0
        %1993 = vmatpush1.msra.mxu0 0.0
        %1994 = vmatprep.subr.mxu0 0.0
        %1995 = vmatpush1.msra.mxu0 0.0
        %1996 = vmatprep.subr.mxu0 0.0
        %1997 = vmatpush1.msra.mxu0 0.0
        %1998 = vmatprep.subr.mxu0 0.0
        %1999 = vmatpush1.msra.mxu0 0.0
        %2000 = vmatprep.subr.mxu0 0.0
        %2001 = vmatpush1.msra.mxu0 0.0
        %2002 = vmatprep.subr.mxu0 0.0
        %2003 = vmatpush1.msra.mxu0 0.0
        %2004 = vmatprep.subr.mxu0 0.0
        %2005 = vmatpush1.msra.mxu0 0.0
        %2006 = vmatprep.mubr.f32.mxu0 0.0
        %v2007 = vand.u32 %v246, 4294901760
        %2008 = vmatmul.mubr.f32.gmra.mrb[0].mxu0 %v2007
        %v2009 = vpop.f32.mrb[0].mxu0
        %v2010 = vadd.f32 %v1905, %v2009
        %v2011 = vpop.f32.mrb[0].mxu0
        %v2012 = vadd.f32 %v1907, %v2011
        %2013 = vmatprep.mubr.f32.mxu0 0.0
        %v2014 = vand.u32 %v249, 4294901760
        %2015 = vmatmul.mubr.f32.gmra.mrb[0].mxu0 %v2014
        %v2016 = vpop.f32.mrb[0].mxu0
        %v2017 = vadd.f32 %v1914, %v2016
        %v2018 = vpop.f32.mrb[0].mxu0
        %v2019 = vadd.f32 %v1916, %v2018
        %2020 = vmatprep.mubr.f32.mxu0 0.0
        %v2021 = vand.u32 %v252, 4294901760
        %2022 = vmatmul.mubr.f32.gmra.mrb[0].mxu0 %v2021
        %v2023 = vpop.f32.mrb[0].mxu0
        %v2024 = vadd.f32 %v1923, %v2023
        %v2025 = vpop.f32.mrb[0].mxu0
        %v2026 = vadd.f32 %v1925, %v2025
        %2027 = vmatprep.mubr.f32.mxu0 0.0
        %v2028 = vand.u32 %v255, 4294901760
        %2029 = vmatmul.mubr.f32.gmra.mrb[0].mxu0 %v2028
        %v2030 = vpop.f32.mrb[0].mxu0
        %v2031 = vadd.f32 %v1932, %v2030
        %v2032 = vpop.f32.mrb[0].mxu0
        %v2033 = vadd.f32 %v1934, %v2032
        %2034 = vdwg.mxu0
        %v2035 = vand.u32 %v1515, 4294901760
        %2036 = vmatprep.subr.mxu0 %v2035
        %v2037 = vand.u32 %v1514, 4294901760
        %2038 = vmatpush1.msra.mxu0 %v2037
        %2039 = vmatprep.subr.mxu0 0.0
        %2040 = vmatpush1.msra.mxu0 0.0
        %2041 = vmatprep.subr.mxu0 0.0
        %2042 = vmatpush1.msra.mxu0 0.0
        %2043 = vmatprep.subr.mxu0 0.0
        %2044 = vmatpush1.msra.mxu0 0.0
        %2045 = vmatprep.subr.mxu0 0.0
        %2046 = vmatpush1.msra.mxu0 0.0
        %2047 = vmatprep.subr.mxu0 0.0
        %2048 = vmatpush1.msra.mxu0 0.0
        %2049 = vmatprep.subr.mxu0 0.0
        %2050 = vmatpush1.msra.mxu0 0.0
        %2051 = vmatprep.subr.mxu0 0.0
        %2052 = vmatpush1.msra.mxu0 0.0
        %2053 = vmatprep.subr.mxu0 0.0
        %2054 = vmatpush1.msra.mxu0 0.0
        %2055 = vmatprep.subr.mxu0 0.0
        %2056 = vmatpush1.msra.mxu0 0.0
        %2057 = vmatprep.subr.mxu0 0.0
        %2058 = vmatpush1.msra.mxu0 0.0
        %2059 = vmatprep.subr.mxu0 0.0
        %2060 = vmatpush1.msra.mxu0 0.0
        %2061 = vmatprep.subr.mxu0 0.0
        %2062 = vmatpush1.msra.mxu0 0.0
        %2063 = vmatprep.subr.mxu0 0.0
        %2064 = vmatpush1.msra.mxu0 0.0
        %2065 = vmatprep.subr.mxu0 0.0
        %2066 = vmatpush1.msra.mxu0 0.0
        %2067 = vmatprep.subr.mxu0 0.0
        %2068 = vmatpush1.msra.mxu0 0.0
        %2069 = vmatprep.subr.mxu0 0.0
        %2070 = vmatpush1.msra.mxu0 0.0
        %2071 = vmatprep.subr.mxu0 0.0
        %2072 = vmatpush1.msra.mxu0 0.0
        %2073 = vmatprep.subr.mxu0 0.0
        %2074 = vmatpush1.msra.mxu0 0.0
        %2075 = vmatprep.subr.mxu0 0.0
        %2076 = vmatpush1.msra.mxu0 0.0
        %2077 = vmatprep.subr.mxu0 0.0
        %2078 = vmatpush1.msra.mxu0 0.0
        %2079 = vmatprep.subr.mxu0 0.0
        %2080 = vmatpush1.msra.mxu0 0.0
        %2081 = vmatprep.subr.mxu0 0.0
        %2082 = vmatpush1.msra.mxu0 0.0
        %2083 = vmatprep.subr.mxu0 0.0
        %2084 = vmatpush1.msra.mxu0 0.0
        %2085 = vmatprep.subr.mxu0 0.0
        %2086 = vmatpush1.msra.mxu0 0.0
        %2087 = vmatprep.subr.mxu0 0.0
        %2088 = vmatpush1.msra.mxu0 0.0
        %2089 = vmatprep.subr.mxu0 0.0
        %2090 = vmatpush1.msra.mxu0 0.0
        %2091 = vmatprep.subr.mxu0 0.0
        %2092 = vmatpush1.msra.mxu0 0.0
        %2093 = vmatprep.subr.mxu0 0.0
        %2094 = vmatpush1.msra.mxu0 0.0
        %2095 = vmatprep.subr.mxu0 0.0
        %2096 = vmatpush1.msra.mxu0 0.0
        %2097 = vmatprep.subr.mxu0 0.0
        %2098 = vmatpush1.msra.mxu0 0.0
        %2099 = vmatprep.subr.mxu0 0.0
        %2100 = vmatpush1.msra.mxu0 0.0
        %2101 = vmatprep.mubr.f32.mxu0 0.0
        %v2102 = vand.u32 %v246, 4294901760
        %2103 = vmatmul.mubr.f32.gmra.mrb[0].mxu0 %v2102
        %v2104 = vpop.f32.mrb[0].mxu0
        %v2105 = vadd.f32 %v2010, %v2104
        %v2106 = vpop.f32.mrb[0].mxu0
        %v2107 = vadd.f32 %v2012, %v2106
        %2108 = vmatprep.mubr.f32.mxu0 0.0
        %v2109 = vand.u32 %v249, 4294901760
        %2110 = vmatmul.mubr.f32.gmra.mrb[0].mxu0 %v2109
        %v2111 = vpop.f32.mrb[0].mxu0
        %v2112 = vadd.f32 %v2017, %v2111
        %v2113 = vpop.f32.mrb[0].mxu0
        %v2114 = vadd.f32 %v2019, %v2113
        %2115 = vmatprep.mubr.f32.mxu0 0.0
        %v2116 = vand.u32 %v252, 4294901760
        %2117 = vmatmul.mubr.f32.gmra.mrb[0].mxu0 %v2116
        %v2118 = vpop.f32.mrb[0].mxu0
        %v2119 = vadd.f32 %v2024, %v2118
        %v2120 = vpop.f32.mrb[0].mxu0
        %v2121 = vadd.f32 %v2026, %v2120
        %2122 = vmatprep.mubr.f32.mxu0 0.0
        %v2123 = vand.u32 %v255, 4294901760
        %2124 = vmatmul.mubr.f32.gmra.mrb[0].mxu0 %v2123
        %v2125 = vpop.f32.mrb[0].mxu0
        %v2126 = vadd.f32 %v2031, %v2125
        %v2127 = vpop.f32.mrb[0].mxu0
        %v2128 = vadd.f32 %v2033, %v2127
        %2129 = vdwg.mxu0
        %v2130 = vand.u32 %v1517, 4294901760
        %2131 = vmatprep.subr.mxu0 %v2130
        %v2132 = vand.u32 %v1516, 4294901760
        %2133 = vmatpush1.msra.mxu0 %v2132
        %2134 = vmatprep.subr.mxu0 0.0
        %2135 = vmatpush1.msra.mxu0 0.0
        %2136 = vmatprep.subr.mxu0 0.0
        %2137 = vmatpush1.msra.mxu0 0.0
        %2138 = vmatprep.subr.mxu0 0.0
        %2139 = vmatpush1.msra.mxu0 0.0
        %2140 = vmatprep.subr.mxu0 0.0
        %2141 = vmatpush1.msra.mxu0 0.0
        %2142 = vmatprep.subr.mxu0 0.0
        %2143 = vmatpush1.msra.mxu0 0.0
        %2144 = vmatprep.subr.mxu0 0.0
        %2145 = vmatpush1.msra.mxu0 0.0
        %2146 = vmatprep.subr.mxu0 0.0
        %2147 = vmatpush1.msra.mxu0 0.0
        %2148 = vmatprep.subr.mxu0 0.0
        %2149 = vmatpush1.msra.mxu0 0.0
        %2150 = vmatprep.subr.mxu0 0.0
        %2151 = vmatpush1.msra.mxu0 0.0
        %2152 = vmatprep.subr.mxu0 0.0
        %2153 = vmatpush1.msra.mxu0 0.0
        %2154 = vmatprep.subr.mxu0 0.0
        %2155 = vmatpush1.msra.mxu0 0.0
        %2156 = vmatprep.subr.mxu0 0.0
        %2157 = vmatpush1.msra.mxu0 0.0
        %2158 = vmatprep.subr.mxu0 0.0
        %2159 = vmatpush1.msra.mxu0 0.0
        %2160 = vmatprep.subr.mxu0 0.0
        %2161 = vmatpush1.msra.mxu0 0.0
        %2162 = vmatprep.subr.mxu0 0.0
        %2163 = vmatpush1.msra.mxu0 0.0
        %2164 = vmatprep.subr.mxu0 0.0
        %2165 = vmatpush1.msra.mxu0 0.0
        %2166 = vmatprep.subr.mxu0 0.0
        %2167 = vmatpush1.msra.mxu0 0.0
        %2168 = vmatprep.subr.mxu0 0.0
        %2169 = vmatpush1.msra.mxu0 0.0
        %2170 = vmatprep.subr.mxu0 0.0
        %2171 = vmatpush1.msra.mxu0 0.0
        %2172 = vmatprep.subr.mxu0 0.0
        %2173 = vmatpush1.msra.mxu0 0.0
        %2174 = vmatprep.subr.mxu0 0.0
        %2175 = vmatpush1.msra.mxu0 0.0
        %2176 = vmatprep.subr.mxu0 0.0
        %2177 = vmatpush1.msra.mxu0 0.0
        %2178 = vmatprep.subr.mxu0 0.0
        %2179 = vmatpush1.msra.mxu0 0.0
        %2180 = vmatprep.subr.mxu0 0.0
        %2181 = vmatpush1.msra.mxu0 0.0
        %2182 = vmatprep.subr.mxu0 0.0
        %2183 = vmatpush1.msra.mxu0 0.0
        %2184 = vmatprep.subr.mxu0 0.0
        %2185 = vmatpush1.msra.mxu0 0.0
        %2186 = vmatprep.subr.mxu0 0.0
        %2187 = vmatpush1.msra.mxu0 0.0
        %2188 = vmatprep.subr.mxu0 0.0
        %2189 = vmatpush1.msra.mxu0 0.0
        %2190 = vmatprep.subr.mxu0 0.0
        %2191 = vmatpush1.msra.mxu0 0.0
        %2192 = vmatprep.subr.mxu0 0.0
        %2193 = vmatpush1.msra.mxu0 0.0
        %2194 = vmatprep.subr.mxu0 0.0
        %2195 = vmatpush1.msra.mxu0 0.0
        %2196 = vmatprep.mubr.f32.mxu0 0.0
        %v2197 = vand.u32 %v246, 4294901760
        %v2198 = vsub.f32 %v246, %v2197
        %v2199 = vand.u32 %v2198, 4294901760
        %v2200 = vsub.f32 %v2198, %v2199
        %v2201 = vand.u32 %v2200, 4294901760
        %2202 = vmatmul.mubr.f32.gmra.mrb[0].mxu0 %v2201
        %v2203 = vpop.f32.mrb[0].mxu0
        %v2204 = vadd.f32 %v223, %v2203
        %v2205 = vpop.f32.mrb[0].mxu0
        %v2206 = vadd.f32 %v223, %v2205
        %2207 = vmatprep.mubr.f32.mxu0 0.0
        %v2208 = vand.u32 %v249, 4294901760
        %v2209 = vsub.f32 %v249, %v2208
        %v2210 = vand.u32 %v2209, 4294901760
        %v2211 = vsub.f32 %v2209, %v2210
        %v2212 = vand.u32 %v2211, 4294901760
        %2213 = vmatmul.mubr.f32.gmra.mrb[0].mxu0 %v2212
        %v2214 = vpop.f32.mrb[0].mxu0
        %v2215 = vadd.f32 %v228, %v2214
        %v2216 = vpop.f32.mrb[0].mxu0
        %v2217 = vadd.f32 %v228, %v2216
        %2218 = vmatprep.mubr.f32.mxu0 0.0
        %v2219 = vand.u32 %v252, 4294901760
        %v2220 = vsub.f32 %v252, %v2219
        %v2221 = vand.u32 %v2220, 4294901760
        %v2222 = vsub.f32 %v2220, %v2221
        %v2223 = vand.u32 %v2222, 4294901760
        %2224 = vmatmul.mubr.f32.gmra.mrb[0].mxu0 %v2223
        %v2225 = vpop.f32.mrb[0].mxu0
        %v2226 = vadd.f32 %v233, %v2225
        %v2227 = vpop.f32.mrb[0].mxu0
        %v2228 = vadd.f32 %v233, %v2227
        %2229 = vmatprep.mubr.f32.mxu0 0.0
        %v2230 = vand.u32 %v255, 4294901760
        %v2231 = vsub.f32 %v255, %v2230
        %v2232 = vand.u32 %v2231, 4294901760
        %v2233 = vsub.f32 %v2231, %v2232
        %v2234 = vand.u32 %v2233, 4294901760
        %2235 = vmatmul.mubr.f32.gmra.mrb[0].mxu0 %v2234
        %v2236 = vpop.f32.mrb[0].mxu0
        %v2237 = vadd.f32 %v238, %v2236
        %v2238 = vpop.f32.mrb[0].mxu0
        %v2239 = vadd.f32 %v238, %v2238
        %2240 = vdwg.mxu0
        %v2241 = vand.u32 %v1517, 4294901760
        %v2242 = vsub.f32 %v1517, %v2241
        %v2243 = vand.u32 %v2242, 4294901760
        %v2244 = vsub.f32 %v2242, %v2243
        %v2245 = vand.u32 %v2244, 4294901760
        %2246 = vmatprep.subr.mxu0 %v2245
        %v2247 = vand.u32 %v1516, 4294901760
        %v2248 = vsub.f32 %v1516, %v2247
        %v2249 = vand.u32 %v2248, 4294901760
        %v2250 = vsub.f32 %v2248, %v2249
        %v2251 = vand.u32 %v2250, 4294901760
        %2252 = vmatpush1.msra.mxu0 %v2251
        %2253 = vmatprep.subr.mxu0 0.0
        %2254 = vmatpush1.msra.mxu0 0.0
        %2255 = vmatprep.subr.mxu0 0.0
        %2256 = vmatpush1.msra.mxu0 0.0
        %2257 = vmatprep.subr.mxu0 0.0
        %2258 = vmatpush1.msra.mxu0 0.0
        %2259 = vmatprep.subr.mxu0 0.0
        %2260 = vmatpush1.msra.mxu0 0.0
        %2261 = vmatprep.subr.mxu0 0.0
        %2262 = vmatpush1.msra.mxu0 0.0
        %2263 = vmatprep.subr.mxu0 0.0
        %2264 = vmatpush1.msra.mxu0 0.0
        %2265 = vmatprep.subr.mxu0 0.0
        %2266 = vmatpush1.msra.mxu0 0.0
        %2267 = vmatprep.subr.mxu0 0.0
        %2268 = vmatpush1.msra.mxu0 0.0
        %2269 = vmatprep.subr.mxu0 0.0
        %2270 = vmatpush1.msra.mxu0 0.0
        %2271 = vmatprep.subr.mxu0 0.0
        %2272 = vmatpush1.msra.mxu0 0.0
        %2273 = vmatprep.subr.mxu0 0.0
        %2274 = vmatpush1.msra.mxu0 0.0
        %2275 = vmatprep.subr.mxu0 0.0
        %2276 = vmatpush1.msra.mxu0 0.0
        %2277 = vmatprep.subr.mxu0 0.0
        %2278 = vmatpush1.msra.mxu0 0.0
        %2279 = vmatprep.subr.mxu0 0.0
        %2280 = vmatpush1.msra.mxu0 0.0
        %2281 = vmatprep.subr.mxu0 0.0
        %2282 = vmatpush1.msra.mxu0 0.0
        %2283 = vmatprep.subr.mxu0 0.0
        %2284 = vmatpush1.msra.mxu0 0.0
        %2285 = vmatprep.subr.mxu0 0.0
        %2286 = vmatpush1.msra.mxu0 0.0
        %2287 = vmatprep.subr.mxu0 0.0
        %2288 = vmatpush1.msra.mxu0 0.0
        %2289 = vmatprep.subr.mxu0 0.0
        %2290 = vmatpush1.msra.mxu0 0.0
        %2291 = vmatprep.subr.mxu0 0.0
        %2292 = vmatpush1.msra.mxu0 0.0
        %2293 = vmatprep.subr.mxu0 0.0
        %2294 = vmatpush1.msra.mxu0 0.0
        %2295 = vmatprep.subr.mxu0 0.0
        %2296 = vmatpush1.msra.mxu0 0.0
        %2297 = vmatprep.subr.mxu0 0.0
        %2298 = vmatpush1.msra.mxu0 0.0
        %2299 = vmatprep.subr.mxu0 0.0
        %2300 = vmatpush1.msra.mxu0 0.0
        %2301 = vmatprep.subr.mxu0 0.0
        %2302 = vmatpush1.msra.mxu0 0.0
        %2303 = vmatprep.subr.mxu0 0.0
        %2304 = vmatpush1.msra.mxu0 0.0
        %2305 = vmatprep.subr.mxu0 0.0
        %2306 = vmatpush1.msra.mxu0 0.0
        %2307 = vmatprep.subr.mxu0 0.0
        %2308 = vmatpush1.msra.mxu0 0.0
        %2309 = vmatprep.subr.mxu0 0.0
        %2310 = vmatpush1.msra.mxu0 0.0
        %2311 = vmatprep.subr.mxu0 0.0
        %2312 = vmatpush1.msra.mxu0 0.0
        %2313 = vmatprep.subr.mxu0 0.0
        %2314 = vmatpush1.msra.mxu0 0.0
        %2315 = vmatprep.mubr.f32.mxu0 0.0
        %v2316 = vand.u32 %v246, 4294901760
        %2317 = vmatmul.mubr.f32.gmra.mrb[0].mxu0 %v2316
        %v2318 = vpop.f32.mrb[0].mxu0
        %v2319 = vadd.f32 %v2204, %v2318
        %v2320 = vpop.f32.mrb[0].mxu0
        %v2321 = vadd.f32 %v2206, %v2320
        %2322 = vmatprep.mubr.f32.mxu0 0.0
        %v2323 = vand.u32 %v249, 4294901760
        %2324 = vmatmul.mubr.f32.gmra.mrb[0].mxu0 %v2323
        %v2325 = vpop.f32.mrb[0].mxu0
        %v2326 = vadd.f32 %v2215, %v2325
        %v2327 = vpop.f32.mrb[0].mxu0
        %v2328 = vadd.f32 %v2217, %v2327
        %2329 = vmatprep.mubr.f32.mxu0 0.0
        %v2330 = vand.u32 %v252, 4294901760
        %2331 = vmatmul.mubr.f32.gmra.mrb[0].mxu0 %v2330
        %v2332 = vpop.f32.mrb[0].mxu0
        %v2333 = vadd.f32 %v2226, %v2332
        %v2334 = vpop.f32.mrb[0].mxu0
        %v2335 = vadd.f32 %v2228, %v2334
        %2336 = vmatprep.mubr.f32.mxu0 0.0
        %v2337 = vand.u32 %v255, 4294901760
        %2338 = vmatmul.mubr.f32.gmra.mrb[0].mxu0 %v2337
        %v2339 = vpop.f32.mrb[0].mxu0
        %v2340 = vadd.f32 %v2237, %v2339
        %v2341 = vpop.f32.mrb[0].mxu0
        %v2342 = vadd.f32 %v2239, %v2341
        %2343 = vdwg.mxu0
        %v2344 = vand.u32 %v1517, 4294901760
        %v2345 = vsub.f32 %v1517, %v2344
        %2346 = vmatprep.subr.mxu0 %v2345
        %v2347 = vand.u32 %v1516, 4294901760
        %v2348 = vsub.f32 %v1516, %v2347
        %2349 = vmatpush1.msra.mxu0 %v2348
        %2350 = vmatprep.subr.mxu0 0.0
        %2351 = vmatpush1.msra.mxu0 0.0
        %2352 = vmatprep.subr.mxu0 0.0
        %2353 = vmatpush1.msra.mxu0 0.0
        %2354 = vmatprep.subr.mxu0 0.0
        %2355 = vmatpush1.msra.mxu0 0.0
        %2356 = vmatprep.subr.mxu0 0.0
        %2357 = vmatpush1.msra.mxu0 0.0
        %2358 = vmatprep.subr.mxu0 0.0
        %2359 = vmatpush1.msra.mxu0 0.0
        %2360 = vmatprep.subr.mxu0 0.0
        %2361 = vmatpush1.msra.mxu0 0.0
        %2362 = vmatprep.subr.mxu0 0.0
        %2363 = vmatpush1.msra.mxu0 0.0
        %2364 = vmatprep.subr.mxu0 0.0
        %2365 = vmatpush1.msra.mxu0 0.0
        %2366 = vmatprep.subr.mxu0 0.0
        %2367 = vmatpush1.msra.mxu0 0.0
        %2368 = vmatprep.subr.mxu0 0.0
        %2369 = vmatpush1.msra.mxu0 0.0
        %2370 = vmatprep.subr.mxu0 0.0
        %2371 = vmatpush1.msra.mxu0 0.0
        %2372 = vmatprep.subr.mxu0 0.0
        %2373 = vmatpush1.msra.mxu0 0.0
        %2374 = vmatprep.subr.mxu0 0.0
        %2375 = vmatpush1.msra.mxu0 0.0
        %2376 = vmatprep.subr.mxu0 0.0
        %2377 = vmatpush1.msra.mxu0 0.0
        %2378 = vmatprep.subr.mxu0 0.0
        %2379 = vmatpush1.msra.mxu0 0.0
        %2380 = vmatprep.subr.mxu0 0.0
        %2381 = vmatpush1.msra.mxu0 0.0
        %2382 = vmatprep.subr.mxu0 0.0
        %2383 = vmatpush1.msra.mxu0 0.0
        %2384 = vmatprep.subr.mxu0 0.0
        %2385 = vmatpush1.msra.mxu0 0.0
        %2386 = vmatprep.subr.mxu0 0.0
        %2387 = vmatpush1.msra.mxu0 0.0
        %2388 = vmatprep.subr.mxu0 0.0
        %2389 = vmatpush1.msra.mxu0 0.0
        %2390 = vmatprep.subr.mxu0 0.0
        %2391 = vmatpush1.msra.mxu0 0.0
        %2392 = vmatprep.subr.mxu0 0.0
        %2393 = vmatpush1.msra.mxu0 0.0
        %2394 = vmatprep.subr.mxu0 0.0
        %2395 = vmatpush1.msra.mxu0 0.0
        %2396 = vmatprep.subr.mxu0 0.0
        %2397 = vmatpush1.msra.mxu0 0.0
        %2398 = vmatprep.subr.mxu0 0.0
        %2399 = vmatpush1.msra.mxu0 0.0
        %2400 = vmatprep.subr.mxu0 0.0
        %2401 = vmatpush1.msra.mxu0 0.0
        %2402 = vmatprep.subr.mxu0 0.0
        %2403 = vmatpush1.msra.mxu0 0.0
        %2404 = vmatprep.subr.mxu0 0.0
        %2405 = vmatpush1.msra.mxu0 0.0
        %2406 = vmatprep.subr.mxu0 0.0
        %2407 = vmatpush1.msra.mxu0 0.0
        %2408 = vmatprep.subr.mxu0 0.0
        %2409 = vmatpush1.msra.mxu0 0.0
        %2410 = vmatprep.subr.mxu0 0.0
        %2411 = vmatpush1.msra.mxu0 0.0
        %2412 = vmatprep.mubr.f32.mxu0 0.0
        %v2413 = vand.u32 %v246, 4294901760
        %v2414 = vsub.f32 %v246, %v2413
        %2415 = vmatmul.mubr.f32.gmra.mrb[0].mxu0 %v2414
        %v2416 = vpop.f32.mrb[0].mxu0
        %v2417 = vadd.f32 %v2319, %v2416
        %v2418 = vpop.f32.mrb[0].mxu0
        %v2419 = vadd.f32 %v2321, %v2418
        %2420 = vmatprep.mubr.f32.mxu0 0.0
        %v2421 = vand.u32 %v249, 4294901760
        %v2422 = vsub.f32 %v249, %v2421
        %2423 = vmatmul.mubr.f32.gmra.mrb[0].mxu0 %v2422
        %v2424 = vpop.f32.mrb[0].mxu0
        %v2425 = vadd.f32 %v2326, %v2424
        %v2426 = vpop.f32.mrb[0].mxu0
        %v2427 = vadd.f32 %v2328, %v2426
        %2428 = vmatprep.mubr.f32.mxu0 0.0
        %v2429 = vand.u32 %v252, 4294901760
        %v2430 = vsub.f32 %v252, %v2429
        %2431 = vmatmul.mubr.f32.gmra.mrb[0].mxu0 %v2430
        %v2432 = vpop.f32.mrb[0].mxu0
        %v2433 = vadd.f32 %v2333, %v2432
        %v2434 = vpop.f32.mrb[0].mxu0
        %v2435 = vadd.f32 %v2335, %v2434
        %2436 = vmatprep.mubr.f32.mxu0 0.0
        %v2437 = vand.u32 %v255, 4294901760
        %v2438 = vsub.f32 %v255, %v2437
        %2439 = vmatmul.mubr.f32.gmra.mrb[0].mxu0 %v2438
        %v2440 = vpop.f32.mrb[0].mxu0
        %v2441 = vadd.f32 %v2340, %v2440
        %v2442 = vpop.f32.mrb[0].mxu0
        %v2443 = vadd.f32 %v2342, %v2442
        %2444 = vdwg.mxu0
        %v2445 = vand.u32 %v1517, 4294901760
        %2446 = vmatprep.subr.mxu0 %v2445
        %v2447 = vand.u32 %v1516, 4294901760
        %2448 = vmatpush1.msra.mxu0 %v2447
        %2449 = vmatprep.subr.mxu0 0.0
        %2450 = vmatpush1.msra.mxu0 0.0
        %2451 = vmatprep.subr.mxu0 0.0
        %2452 = vmatpush1.msra.mxu0 0.0
        %2453 = vmatprep.subr.mxu0 0.0
        %2454 = vmatpush1.msra.mxu0 0.0
        %2455 = vmatprep.subr.mxu0 0.0
        %2456 = vmatpush1.msra.mxu0 0.0
        %2457 = vmatprep.subr.mxu0 0.0
        %2458 = vmatpush1.msra.mxu0 0.0
        %2459 = vmatprep.subr.mxu0 0.0
        %2460 = vmatpush1.msra.mxu0 0.0
        %2461 = vmatprep.subr.mxu0 0.0
        %2462 = vmatpush1.msra.mxu0 0.0
        %2463 = vmatprep.subr.mxu0 0.0
        %2464 = vmatpush1.msra.mxu0 0.0
        %2465 = vmatprep.subr.mxu0 0.0
        %2466 = vmatpush1.msra.mxu0 0.0
        %2467 = vmatprep.subr.mxu0 0.0
        %2468 = vmatpush1.msra.mxu0 0.0
        %2469 = vmatprep.subr.mxu0 0.0
        %2470 = vmatpush1.msra.mxu0 0.0
        %2471 = vmatprep.subr.mxu0 0.0
        %2472 = vmatpush1.msra.mxu0 0.0
        %2473 = vmatprep.subr.mxu0 0.0
        %2474 = vmatpush1.msra.mxu0 0.0
        %2475 = vmatprep.subr.mxu0 0.0
        %2476 = vmatpush1.msra.mxu0 0.0
        %2477 = vmatprep.subr.mxu0 0.0
        %2478 = vmatpush1.msra.mxu0 0.0
        %2479 = vmatprep.subr.mxu0 0.0
        %2480 = vmatpush1.msra.mxu0 0.0
        %2481 = vmatprep.subr.mxu0 0.0
        %2482 = vmatpush1.msra.mxu0 0.0
        %2483 = vmatprep.subr.mxu0 0.0
        %2484 = vmatpush1.msra.mxu0 0.0
        %2485 = vmatprep.subr.mxu0 0.0
        %2486 = vmatpush1.msra.mxu0 0.0
        %2487 = vmatprep.subr.mxu0 0.0
        %2488 = vmatpush1.msra.mxu0 0.0
        %2489 = vmatprep.subr.mxu0 0.0
        %2490 = vmatpush1.msra.mxu0 0.0
        %2491 = vmatprep.subr.mxu0 0.0
        %2492 = vmatpush1.msra.mxu0 0.0
        %2493 = vmatprep.subr.mxu0 0.0
        %2494 = vmatpush1.msra.mxu0 0.0
        %2495 = vmatprep.subr.mxu0 0.0
        %2496 = vmatpush1.msra.mxu0 0.0
        %2497 = vmatprep.subr.mxu0 0.0
        %2498 = vmatpush1.msra.mxu0 0.0
        %2499 = vmatprep.subr.mxu0 0.0
        %2500 = vmatpush1.msra.mxu0 0.0
        %2501 = vmatprep.subr.mxu0 0.0
        %2502 = vmatpush1.msra.mxu0 0.0
        %2503 = vmatprep.subr.mxu0 0.0
        %2504 = vmatpush1.msra.mxu0 0.0
        %2505 = vmatprep.subr.mxu0 0.0
        %2506 = vmatpush1.msra.mxu0 0.0
        %2507 = vmatprep.subr.mxu0 0.0
        %2508 = vmatpush1.msra.mxu0 0.0
        %2509 = vmatprep.subr.mxu0 0.0
        %2510 = vmatpush1.msra.mxu0 0.0
        %2511 = vmatprep.mubr.f32.mxu0 0.0
        %v2512 = vand.u32 %v246, 4294901760
        %v2513 = vsub.f32 %v246, %v2512
        %v2514 = vand.u32 %v2513, 4294901760
        %2515 = vmatmul.mubr.f32.gmra.mrb[0].mxu0 %v2514
        %v2516 = vpop.f32.mrb[0].mxu0
        %v2517 = vadd.f32 %v2417, %v2516
        %v2518 = vpop.f32.mrb[0].mxu0
        %v2519 = vadd.f32 %v2419, %v2518
        %2520 = vmatprep.mubr.f32.mxu0 0.0
        %v2521 = vand.u32 %v249, 4294901760
        %v2522 = vsub.f32 %v249, %v2521
        %v2523 = vand.u32 %v2522, 4294901760
        %2524 = vmatmul.mubr.f32.gmra.mrb[0].mxu0 %v2523
        %v2525 = vpop.f32.mrb[0].mxu0
        %v2526 = vadd.f32 %v2425, %v2525
        %v2527 = vpop.f32.mrb[0].mxu0
        %v2528 = vadd.f32 %v2427, %v2527
        %2529 = vmatprep.mubr.f32.mxu0 0.0
        %v2530 = vand.u32 %v252, 4294901760
        %v2531 = vsub.f32 %v252, %v2530
        %v2532 = vand.u32 %v2531, 4294901760
        %2533 = vmatmul.mubr.f32.gmra.mrb[0].mxu0 %v2532
        %v2534 = vpop.f32.mrb[0].mxu0
        %v2535 = vadd.f32 %v2433, %v2534
        %v2536 = vpop.f32.mrb[0].mxu0
        %v2537 = vadd.f32 %v2435, %v2536
        %2538 = vmatprep.mubr.f32.mxu0 0.0
        %v2539 = vand.u32 %v255, 4294901760
        %v2540 = vsub.f32 %v255, %v2539
        %v2541 = vand.u32 %v2540, 4294901760
        %2542 = vmatmul.mubr.f32.gmra.mrb[0].mxu0 %v2541
        %v2543 = vpop.f32.mrb[0].mxu0
        %v2544 = vadd.f32 %v2441, %v2543
        %v2545 = vpop.f32.mrb[0].mxu0
        %v2546 = vadd.f32 %v2443, %v2545
        %2547 = vdwg.mxu0
        %v2548 = vand.u32 %v1517, 4294901760
        %v2549 = vsub.f32 %v1517, %v2548
        %v2550 = vand.u32 %v2549, 4294901760
        %2551 = vmatprep.subr.mxu0 %v2550
        %v2552 = vand.u32 %v1516, 4294901760
        %v2553 = vsub.f32 %v1516, %v2552
        %v2554 = vand.u32 %v2553, 4294901760
        %2555 = vmatpush1.msra.mxu0 %v2554
        %2556 = vmatprep.subr.mxu0 0.0
        %2557 = vmatpush1.msra.mxu0 0.0
        %2558 = vmatprep.subr.mxu0 0.0
        %2559 = vmatpush1.msra.mxu0 0.0
        %2560 = vmatprep.subr.mxu0 0.0
        %2561 = vmatpush1.msra.mxu0 0.0
        %2562 = vmatprep.subr.mxu0 0.0
        %2563 = vmatpush1.msra.mxu0 0.0
        %2564 = vmatprep.subr.mxu0 0.0
        %2565 = vmatpush1.msra.mxu0 0.0
        %2566 = vmatprep.subr.mxu0 0.0
        %2567 = vmatpush1.msra.mxu0 0.0
        %2568 = vmatprep.subr.mxu0 0.0
        %2569 = vmatpush1.msra.mxu0 0.0
        %2570 = vmatprep.subr.mxu0 0.0
        %2571 = vmatpush1.msra.mxu0 0.0
        %2572 = vmatprep.subr.mxu0 0.0
        %2573 = vmatpush1.msra.mxu0 0.0
        %2574 = vmatprep.subr.mxu0 0.0
        %2575 = vmatpush1.msra.mxu0 0.0
        %2576 = vmatprep.subr.mxu0 0.0
        %2577 = vmatpush1.msra.mxu0 0.0
        %2578 = vmatprep.subr.mxu0 0.0
        %2579 = vmatpush1.msra.mxu0 0.0
        %2580 = vmatprep.subr.mxu0 0.0
        %2581 = vmatpush1.msra.mxu0 0.0
        %2582 = vmatprep.subr.mxu0 0.0
        %2583 = vmatpush1.msra.mxu0 0.0
        %2584 = vmatprep.subr.mxu0 0.0
        %2585 = vmatpush1.msra.mxu0 0.0
        %2586 = vmatprep.subr.mxu0 0.0
        %2587 = vmatpush1.msra.mxu0 0.0
        %2588 = vmatprep.subr.mxu0 0.0
        %2589 = vmatpush1.msra.mxu0 0.0
        %2590 = vmatprep.subr.mxu0 0.0
        %2591 = vmatpush1.msra.mxu0 0.0
        %2592 = vmatprep.subr.mxu0 0.0
        %2593 = vmatpush1.msra.mxu0 0.0
        %2594 = vmatprep.subr.mxu0 0.0
        %2595 = vmatpush1.msra.mxu0 0.0
        %2596 = vmatprep.subr.mxu0 0.0
        %2597 = vmatpush1.msra.mxu0 0.0
        %2598 = vmatprep.subr.mxu0 0.0
        %2599 = vmatpush1.msra.mxu0 0.0
        %2600 = vmatprep.subr.mxu0 0.0
        %2601 = vmatpush1.msra.mxu0 0.0
        %2602 = vmatprep.subr.mxu0 0.0
        %2603 = vmatpush1.msra.mxu0 0.0
        %2604 = vmatprep.subr.mxu0 0.0
        %2605 = vmatpush1.msra.mxu0 0.0
        %2606 = vmatprep.subr.mxu0 0.0
        %2607 = vmatpush1.msra.mxu0 0.0
        %2608 = vmatprep.subr.mxu0 0.0
        %2609 = vmatpush1.msra.mxu0 0.0
        %2610 = vmatprep.subr.mxu0 0.0
        %2611 = vmatpush1.msra.mxu0 0.0
        %2612 = vmatprep.subr.mxu0 0.0
        %2613 = vmatpush1.msra.mxu0 0.0
        %2614 = vmatprep.subr.mxu0 0.0
        %2615 = vmatpush1.msra.mxu0 0.0
        %2616 = vmatprep.subr.mxu0 0.0
        %2617 = vmatpush1.msra.mxu0 0.0
        %2618 = vmatprep.mubr.f32.mxu0 0.0
        %v2619 = vand.u32 %v246, 4294901760
        %2620 = vmatmul.mubr.f32.gmra.mrb[0].mxu0 %v2619
        %v2621 = vpop.f32.mrb[0].mxu0
        %v2622 = vadd.f32 %v2517, %v2621
        %v2623 = vpop.f32.mrb[0].mxu0
        %v2624 = vadd.f32 %v2519, %v2623
        %2625 = vmatprep.mubr.f32.mxu0 0.0
        %v2626 = vand.u32 %v249, 4294901760
        %2627 = vmatmul.mubr.f32.gmra.mrb[0].mxu0 %v2626
        %v2628 = vpop.f32.mrb[0].mxu0
        %v2629 = vadd.f32 %v2526, %v2628
        %v2630 = vpop.f32.mrb[0].mxu0
        %v2631 = vadd.f32 %v2528, %v2630
        %2632 = vmatprep.mubr.f32.mxu0 0.0
        %v2633 = vand.u32 %v252, 4294901760
        %2634 = vmatmul.mubr.f32.gmra.mrb[0].mxu0 %v2633
        %v2635 = vpop.f32.mrb[0].mxu0
        %v2636 = vadd.f32 %v2535, %v2635
        %v2637 = vpop.f32.mrb[0].mxu0
        %v2638 = vadd.f32 %v2537, %v2637
        %2639 = vmatprep.mubr.f32.mxu0 0.0
        %v2640 = vand.u32 %v255, 4294901760
        %2641 = vmatmul.mubr.f32.gmra.mrb[0].mxu0 %v2640
        %v2642 = vpop.f32.mrb[0].mxu0
        %v2643 = vadd.f32 %v2544, %v2642
        %v2644 = vpop.f32.mrb[0].mxu0
        %v2645 = vadd.f32 %v2546, %v2644
        %2646 = vdwg.mxu0
        %v2647 = vand.u32 %v1517, 4294901760
        %2648 = vmatprep.subr.mxu0 %v2647
        %v2649 = vand.u32 %v1516, 4294901760
        %2650 = vmatpush1.msra.mxu0 %v2649
        %2651 = vmatprep.subr.mxu0 0.0
        %2652 = vmatpush1.msra.mxu0 0.0
        %2653 = vmatprep.subr.mxu0 0.0
        %2654 = vmatpush1.msra.mxu0 0.0
        %2655 = vmatprep.subr.mxu0 0.0
        %2656 = vmatpush1.msra.mxu0 0.0
        %2657 = vmatprep.subr.mxu0 0.0
        %2658 = vmatpush1.msra.mxu0 0.0
        %2659 = vmatprep.subr.mxu0 0.0
        %2660 = vmatpush1.msra.mxu0 0.0
        %2661 = vmatprep.subr.mxu0 0.0
        %2662 = vmatpush1.msra.mxu0 0.0
        %2663 = vmatprep.subr.mxu0 0.0
        %2664 = vmatpush1.msra.mxu0 0.0
        %2665 = vmatprep.subr.mxu0 0.0
        %2666 = vmatpush1.msra.mxu0 0.0
        %2667 = vmatprep.subr.mxu0 0.0
        %2668 = vmatpush1.msra.mxu0 0.0
        %2669 = vmatprep.subr.mxu0 0.0
        %2670 = vmatpush1.msra.mxu0 0.0
        %2671 = vmatprep.subr.mxu0 0.0
        %2672 = vmatpush1.msra.mxu0 0.0
        %2673 = vmatprep.subr.mxu0 0.0
        %2674 = vmatpush1.msra.mxu0 0.0
        %2675 = vmatprep.subr.mxu0 0.0
        %2676 = vmatpush1.msra.mxu0 0.0
        %2677 = vmatprep.subr.mxu0 0.0
        %2678 = vmatpush1.msra.mxu0 0.0
        %2679 = vmatprep.subr.mxu0 0.0
        %2680 = vmatpush1.msra.mxu0 0.0
        %2681 = vmatprep.subr.mxu0 0.0
        %2682 = vmatpush1.msra.mxu0 0.0
        %2683 = vmatprep.subr.mxu0 0.0
        %2684 = vmatpush1.msra.mxu0 0.0
        %2685 = vmatprep.subr.mxu0 0.0
        %2686 = vmatpush1.msra.mxu0 0.0
        %2687 = vmatprep.subr.mxu0 0.0
        %2688 = vmatpush1.msra.mxu0 0.0
        %2689 = vmatprep.subr.mxu0 0.0
        %2690 = vmatpush1.msra.mxu0 0.0
        %2691 = vmatprep.subr.mxu0 0.0
        %2692 = vmatpush1.msra.mxu0 0.0
        %2693 = vmatprep.subr.mxu0 0.0
        %2694 = vmatpush1.msra.mxu0 0.0
        %2695 = vmatprep.subr.mxu0 0.0
        %2696 = vmatpush1.msra.mxu0 0.0
        %2697 = vmatprep.subr.mxu0 0.0
        %2698 = vmatpush1.msra.mxu0 0.0
        %2699 = vmatprep.subr.mxu0 0.0
        %2700 = vmatpush1.msra.mxu0 0.0
        %2701 = vmatprep.subr.mxu0 0.0
        %2702 = vmatpush1.msra.mxu0 0.0
        %2703 = vmatprep.subr.mxu0 0.0
        %2704 = vmatpush1.msra.mxu0 0.0
        %2705 = vmatprep.subr.mxu0 0.0
        %2706 = vmatpush1.msra.mxu0 0.0
        %2707 = vmatprep.subr.mxu0 0.0
        %2708 = vmatpush1.msra.mxu0 0.0
        %2709 = vmatprep.subr.mxu0 0.0
        %2710 = vmatpush1.msra.mxu0 0.0
        %2711 = vmatprep.subr.mxu0 0.0
        %2712 = vmatpush1.msra.mxu0 0.0
        %2713 = vmatprep.mubr.f32.mxu0 0.0
        %v2714 = vand.u32 %v246, 4294901760
        %2715 = vmatmul.mubr.f32.gmra.mrb[0].mxu0 %v2714
        %v2716 = vpop.f32.mrb[0].mxu0
        %v2717 = vadd.f32 %v2622, %v2716
        %v2718 = vpop.f32.mrb[0].mxu0
        %v2719 = vadd.f32 %v2624, %v2718
        %2720 = vmatprep.mubr.f32.mxu0 0.0
        %v2721 = vand.u32 %v249, 4294901760
        %2722 = vmatmul.mubr.f32.gmra.mrb[0].mxu0 %v2721
        %v2723 = vpop.f32.mrb[0].mxu0
        %v2724 = vadd.f32 %v2629, %v2723
        %v2725 = vpop.f32.mrb[0].mxu0
        %v2726 = vadd.f32 %v2631, %v2725
        %2727 = vmatprep.mubr.f32.mxu0 0.0
        %v2728 = vand.u32 %v252, 4294901760
        %2729 = vmatmul.mubr.f32.gmra.mrb[0].mxu0 %v2728
        %v2730 = vpop.f32.mrb[0].mxu0
        %v2731 = vadd.f32 %v2636, %v2730
        %v2732 = vpop.f32.mrb[0].mxu0
        %v2733 = vadd.f32 %v2638, %v2732
        %2734 = vmatprep.mubr.f32.mxu0 0.0
        %v2735 = vand.u32 %v255, 4294901760
        %2736 = vmatmul.mubr.f32.gmra.mrb[0].mxu0 %v2735
        %v2737 = vpop.f32.mrb[0].mxu0
        %v2738 = vadd.f32 %v2643, %v2737
        %v2739 = vpop.f32.mrb[0].mxu0
        %v2740 = vadd.f32 %v2645, %v2739
        %2741 = vdwg.mxu0
        %v2742 = vmax.f32 %v2105, 0.0
        %v2743 = vmax.f32 %v2107, 0.0
        %v2744 = vmax.f32 %v2717, 0.0
        %v2745 = vmax.f32 %v2719, 0.0
        %v2746 = vmax.f32 %v2112, 0.0
        %v2747 = vmax.f32 %v2114, 0.0
        %v2748 = vmax.f32 %v2724, 0.0
        %v2749 = vmax.f32 %v2726, 0.0
        %v2750 = vmax.f32 %v2119, 0.0
        %v2751 = vmax.f32 %v2121, 0.0
        %v2752 = vmax.f32 %v2731, 0.0
        %v2753 = vmax.f32 %v2733, 0.0
        %v2754 = vmax.f32 %v2126, 0.0
        %v2755 = vmax.f32 %v2128, 0.0
        %v2756 = vmax.f32 %v2738, 0.0
        %v2757 = vmax.f32 %v2740, 0.0
        %s2758 = scalar_lea.vmem %s207, 128 [#allocation5]
        %2759 = vst [vmem:[%s2758] sm:$0xff] %v2742
        %2760 = vst [vmem:[%s2758 + $0x8] sm:$0xff] %v2743
        %2761 = vst [vmem:[%s2758 + $0x10] sm:$0xff] %v2744
        %2762 = vst [vmem:[%s2758 + $0x18] sm:$0xff] %v2745
        %2763 = vst [vmem:[%s2758 + $0x20] sm:$0xff] %v2746
        %2764 = vst [vmem:[%s2758 + $0x28] sm:$0xff] %v2747
        %2765 = vst [vmem:[%s2758 + $0x30] sm:$0xff] %v2748
        %2766 = vst [vmem:[%s2758 + $0x38] sm:$0xff] %v2749
        %2767 = vst [vmem:[%s2758 + $0x40] sm:$0xff] %v2750
        %2768 = vst [vmem:[%s2758 + $0x48] sm:$0xff] %v2751
        %2769 = vst [vmem:[%s2758 + $0x50] sm:$0xff] %v2752
        %2770 = vst [vmem:[%s2758 + $0x58] sm:$0xff] %v2753
        %2771 = vst [vmem:[%s2758 + $0x60] sm:$0xff] %v2754
        %2772 = vst [vmem:[%s2758 + $0x68] sm:$0xff] %v2755
        %2773 = vst [vmem:[%s2758 + $0x70] sm:$0xff] %v2756
        %2774 = vst [vmem:[%s2758 + $0x78] sm:$0xff] %v2757
        %s2775 = sand.u32 %s112, 1
        %s2776 = scalar_lea.sflag [#allocation4], %s2775
        %s2777 = sand.u32 %s112, 1
        %s2778 = smul.addr %s2777, 256
        %s2779 = scalar_lea.vmem [#allocation5], %s2778
        // Predicated region
        $region37: #{tpu_custom_call.1} parent=31 // pred_check
          %p2780 = pneg %p122
        $region38: #{tpu_custom_call.1} parent=31 // pred_check_branch
          %2782 = sbr.rel (%p2780) target = $region40
        $region39: #{tpu_custom_call.1} parent=31 // pred_region
          %s2783 = smul.u32 2, %s24
          %s2784 = smul.u32 4, %s25
          %s2786 = ssub.s32 4096, 4096
          %2787 = vsyncadd %s2776, %s2786
          %s2788 = smul.addr %s2783, 16
          %s2789 = sadd.s32 %s2784, %s2788
          %s2790 = smul.addr %s2789, 128
          %s2791 = scalar_lea.hbm %s3, %s2790
          %s2792 = sshll.u32 %s2779, 4
          %s2793 = int_to_ptr.vmem [resolvable:$true] %s2792
          %2798 = dma.vmem_to_hbm [thread:$0]  %s2793, 4096, %s2791, %s2776, 512, 512, 32
        $region40: #{tpu_custom_call.1} parent=31 // pred_fallthru
          _
      $region32: #{tpu_custom_call.1} parent=5 // pred_fallthru
        _
      %p2799 = scmp.le.s32.totalorder 2, %s15
      // Predicated region
      $region41: #{tpu_custom_call.1} parent=5 // pred_check
        %p2800 = pneg %p2799
      $region42: #{tpu_custom_call.1} parent=5 // pred_check_branch
        %2802 = sbr.rel (%p2800) target = $region44
      $region43: #{tpu_custom_call.1} parent=5 // pred_region
        %s2803 = ssub.s32 %s15, 2
        // Predicated region
        $region45: #{tpu_custom_call.1} parent=43 // pred_check
          %p2804 = pneg %p128
        $region46: #{tpu_custom_call.1} parent=43 // pred_check_branch
          %2806 = sbr.rel (%p2804) target = $region48
        $region47: #{tpu_custom_call.1} parent=43 // pred_region
          %s2807 = sand.u32 %s113, 1
          %s2808 = scalar_lea.sflag [#allocation4], %s2807
          %s2809 = sand.u32 %s113, 1
          %s2810 = smul.addr %s2809, 256
          %s2811 = scalar_lea.vmem [#allocation5], %s2810
          %2812 = dma.done %s2808, 4096
        $region48: #{tpu_custom_call.1} parent=43 // pred_fallthru
          _
      $region44: #{tpu_custom_call.1} parent=5 // pred_fallthru
        _
    $region6: #{tpu_custom_call.1} parent=1 // loop_footer
      %s19 = sadd.s32 1, %s15
    $region7: #{tpu_custom_call.1} parent=1 // loop_footer_branch
      %14 = sbr.rel target = $region3
    $region8: #{tpu_custom_call.1} parent=1 // loop_exit
      _
    %2813 = vsyncpa [#allocation3], 1
    %s2814 = scalar_lea.sflag [#allocation3], 1
    %2815 = vsyncpa %s2814, 1
    %2816 = vsyncpa [#allocation4], 1
    %s2817 = scalar_lea.sflag [#allocation4], 1
    %2818 = vsyncpa %s2817, 1

</llo_original>
